<compile_context>
chip_gen: v7x
topology: tpu7x:2x2x1
jax: 0.10.0
libtpu: 0.0.40
codegen_flags: <defaults>
</compile_context>

<pallas_src>
import functools

import jax
import jax.numpy as jnp
import numpy as np
from jax.experimental import pallas as pl
from jax.experimental.pallas import tpu as pltpu


# ------------------------------ fused kernel --------------------------------

def _fpn_fused_kernel(x2_ref, x1_ref, x0_ref, mask_ref, w_ref, o_ref, *, wa, meta):
    """Whole FPN_M forward on the coarse (N, Ha, Wa) raster.

    Row layout everywhere: r = n*Ha*Wa + i*Wa + j (the level-2 grid).  Finer
    pyramid levels are carried as 2x2 / 4x4 sub-pixel phase planes packed
    along lanes over the same rows.  `w_ref` is one packed slab holding every
    BN-folded weight / bias (static row offsets in `meta["off"]`).
    """
    f32 = jnp.float32
    f0, f1, f2 = meta["f0"], meta["f1"], meta["f2"]
    h0, h1, ch = meta["h0"], meta["h1"], meta["ch"]
    off = meta["off"]
    rows = x2_ref.shape[0]

    def mat(name, nr, nc):                       # (nr, nc) weight slice
        r0 = off[name]
        return w_ref[r0:r0 + nr, 0:nc]

    def row(name, nc, i=0):                      # single (1, nc) row slice
        r0 = off[name] + i
        return w_ref[r0:r0 + 1, 0:nc]

    # Boundary masks (lane-dense), preloaded once and pre-sliced per width.
    m_full = [mask_ref[k] for k in range(9)]
    m_h0 = [m[:, :h0] for m in m_full]
    m_h1 = [m[:, :h1] for m in m_full]

    def shift(x, sy, sx, masks):
        # x[(n,i,j), :] -> x[(n, i+sy, j+sx), :]; zero outside the coarse grid
        # (the mask also kills cross-row / cross-batch / wrap-around bleed).
        s = sy * wa + sx
        if s == 0:
            return x
        return jnp.roll(x, -s, axis=0) * masks[(sy + 1) * 3 + (sx + 1)]

    # ---- conv[0]: InvertedResidual(f2 -> f1, expand=2) on the coarse grid ---
    h = jnp.dot(x2_ref[...], mat("c0e", f2, h0), preferred_element_type=f32)
    h = jnp.clip(h + row("c0e_b", h0), 0.0, 6.0)

    acc = None                                   # 3x3 depthwise (coarse grid)
    for ky in (-1, 0, 1):
        for kx in (-1, 0, 1):
            t = (ky + 1) * 3 + (kx + 1)
            term = shift(h, ky, kx, m_h0) * row("c0d", h0, t)
            acc = term if acc is None else acc + term
    h = jnp.clip(acc + row("c0d_b", h0), 0.0, 6.0)
    h = jnp.dot(h, mat("c0p", h0, f1), preferred_element_type=f32) + row("c0p_b", f1)

    # ---- upsample[0] (4 taps in ONE matmul) + x1 skip + conv[1] expand ------
    up0 = jnp.dot(h, mat("up0", f1, 4 * f1), preferred_element_type=f32)
    e = jnp.dot(up0 + x1_ref[...], mat("c1e", 4 * f1, 4 * h1),
                preferred_element_type=f32)
    e = jnp.clip(e + row("c1e_b", 4 * h1), 0.0, 6.0)          # (R, 4*h1)

    # ---- conv[1] depthwise 3x3 on the 2x-fine grid (4 phase planes) ---------
    eph = [e[:, t * h1:(t + 1) * h1] for t in range(4)]       # phase t = dy*2+dx
    # Only 16 distinct (input phase, coarse shift) planes exist; build them once.
    pairs = ((0, 0), (1, 0), (1, -1), (0, 1))                 # (phase, shift) in 1-D
    sh = {}
    for py, qy in pairs:
        for px, qx in pairs:
            sh[(py, px, qy, qx)] = shift(eph[py * 2 + px], qy, qx, m_h1)
    # Hoist the 9 tap-weight broadcasts (each reused by all 4 output phases).
    wt = [jnp.broadcast_to(row("c1d", h1, t), (rows, h1)) for t in range(9)]
    outs = []
    for dy in range(2):
        for dx in range(2):
            acc = None
            for ky in (-1, 0, 1):
                ay = dy + ky
                py, qy = ay % 2, (ay - ay % 2) // 2
                for kx in (-1, 0, 1):
                    ax = dx + kx
                    px, qx = ax % 2, (ax - ax % 2) // 2
                    t = (ky + 1) * 3 + (kx + 1)
                    term = sh[(py, px, qy, qx)] * wt[t]
                    acc = term if acc is None else acc + term
            outs.append(acc)
    d = jnp.clip(jnp.concatenate(outs, axis=1) + row("c1d_b", 4 * h1), 0.0, 6.0)

    # ---- conv[1] project + upsample[1] + x0 skip + conv[2]: 3 packed matmuls,
    #      one lane-dense (R, 16*ch) store -------------------------------------
    pj = jnp.dot(d, mat("c1p", 4 * h1, 4 * f0), preferred_element_type=f32)
    pj = pj + row("c1p_b", 4 * f0)
    xin = jnp.dot(pj, mat("up1", 4 * f0, 16 * f0), preferred_element_type=f32)
    xin = xin + x0_ref[...]
    y = jnp.dot(xin, mat("c2", 16 * f0, 16 * ch), preferred_element_type=f32)
    o_ref[...] = jnp.clip(y + row("c2_b", 16 * ch), 0.0, 6.0)


# -------------------------- host-side packing glue ---------------------------

def _coarse_masks(n, h, w, width):
    """(9, n*h*w, width) f32: mask[(sy+1)*3+(sx+1), r, :] = 1 iff (i+sy, j+sx)
    lies in the h x w grid, pre-broadcast to lane width (full-vreg multiply)."""
    ii = np.repeat(np.arange(h), w)
    jj = np.tile(np.arange(w), h)
    ms = []
    for sy in (-1, 0, 1):
        for sx in (-1, 0, 1):
            m = ((ii + sy >= 0) & (ii + sy < h) & (jj + sx >= 0) & (jj + sx < w))
            ms.append(np.tile(m, n))
    arr = np.stack(ms).astype(np.float32)                   # (9, n*h*w)
    arr = np.broadcast_to(arr[:, :, None], (9, n * h * w, width)).copy()
    return jnp.asarray(arr)


def _pack_rows(named_mats, lane_width):
    """Stack 2-D matrices into one (rows, lane_width) f32 slab.  Each matrix
    starts at an 8-aligned row so in-kernel slices stay sublane-aligned."""
    offs, rows = {}, 0
    for name, m in named_mats.items():
        offs[name] = rows
        rows += -(-m.shape[0] // 8) * 8
    slab = jnp.zeros((max(rows, 8), lane_width), jnp.float32)
    for name, m in named_mats.items():
        slab = slab.at[offs[name]:offs[name] + m.shape[0],
                       :m.shape[1]].set(m.astype(jnp.float32))
    return slab, offs


def pack_fpn_params(params):
    """One-off packing of all BN-folded weights into a single VMEM slab.
    Returns (slab, meta) where meta holds only static Python ints."""
    p = params
    f2, h0 = p["c0_exp_w"].shape
    f1 = p["c0_prj_w"].shape[1]
    h1 = p["c1_exp_w"].shape[1]
    f0 = p["c1_prj_w"].shape[1]
    ch = p["c2_w"].shape[1]

    def fold_pw(w, s):                  # 1x1 conv weight (Cin, Cout), BN folded
        return w * s[None, :]

    def fold_dw(w, s):                  # depthwise (3,3,C) -> (9, C), BN folded
        return (w * s[None, None, :]).reshape(9, -1)

    def up_taps(w):                     # ConvTranspose(k=2,s=2): (Cin,Cout,2,2)
        cin, cout = w.shape[0], w.shape[1]
        return jnp.transpose(w, (0, 2, 3, 1)).reshape(cin, 4 * cout)

    def bdiag(w, k):                    # (A,B) -> (kA, kB) block diagonal
        a, b = w.shape
        out = jnp.zeros((k * a, k * b), w.dtype)
        for t in range(k):
            out = out.at[t * a:(t + 1) * a, t * b:(t + 1) * b].set(w)
        return out

    mats = {
        "c0e": fold_pw(p["c0_exp_w"], p["c0_exp_scale"]),
        "c0p": fold_pw(p["c0_prj_w"], p["c0_prj_scale"]),
        "up0": up_taps(p["up0_w"]),                                   # (f1, 4f1)
        "c1e": bdiag(fold_pw(p["c1_exp_w"], p["c1_exp_scale"]), 4),   # (4f1, 4h1)
        "c1p": bdiag(fold_pw(p["c1_prj_w"], p["c1_prj_scale"]), 4),   # (4h1, 4f0)
        "up1": bdiag(up_taps(p["up1_w"]), 4),                         # (4f0, 16f0)
        "c2":  bdiag(fold_pw(p["c2_w"], p["c2_scale"]), 16),          # (16f0,16ch)
        "c0d": fold_dw(p["c0_dw_w"], p["c0_dw_scale"]),
        "c1d": fold_dw(p["c1_dw_w"], p["c1_dw_scale"]),
        "c0e_b": p["c0_exp_bias"][None, :],
        "c0d_b": p["c0_dw_bias"][None, :],
        "c0p_b": p["c0_prj_bias"][None, :],
        "c1e_b": jnp.tile(p["c1_exp_bias"], 4)[None, :],
        "c1d_b": jnp.tile(p["c1_dw_bias"], 4)[None, :],
        "c1p_b": jnp.tile(p["c1_prj_bias"], 4)[None, :],
        "c2_b":  jnp.tile(p["c2_bias"], 16)[None, :],
    }
    lane_w = -(-max(m.shape[1] for m in mats.values()) // 128) * 128
    slab, offs = _pack_rows(mats, lane_w)
    meta = dict(f0=f0, f1=f1, f2=f2, h0=h0, h1=h1, ch=ch, off=offs)
    return slab, meta


# ---------------------------------- forward ----------------------------------

def fpn_m_forward(slab, x_nchw_list, *, meta):
    """x_nchw_list = [x0, x1, x2] (NCHW) with spatial sizes 4S, 2S, S."""
    x0, x1, x2 = x_nchw_list
    n, f2, ha, wa = x2.shape
    f1, f0, ch = meta["f1"], meta["f0"], meta["ch"]
    r = n * ha * wa

    # XLA-side layout glue on the inputs only; intermediates never leave VMEM.
    x2_2d = jnp.transpose(x2, (0, 2, 3, 1)).reshape(r, f2)
    # level-1 skip packed as (r, 4*f1): lane block t = dy*2+dx.
    x1_pk = (jnp.transpose(x1, (0, 2, 3, 1))
             .reshape(n, ha, 2, wa, 2, f1)
             .transpose(0, 1, 3, 2, 4, 5)
             .reshape(r, 4 * f1))
    # level-0 skip packed as (r, 16*f0): lane block s = 4*t1 + t0.
    x0_pk = (jnp.transpose(x0, (0, 2, 3, 1))
             .reshape(n, ha, 2, 2, wa, 2, 2, f0)
             .transpose(0, 1, 4, 2, 5, 3, 6, 7)
             .reshape(r, 16 * f0))
    masks = _coarse_masks(n, ha, wa, max(meta["h0"], meta["h1"]))

    vmem = pl.BlockSpec(memory_space=pltpu.MemorySpace.VMEM)
    out2d = pl.pallas_call(
        functools.partial(_fpn_fused_kernel, wa=wa, meta=meta),
        out_shape=jax.ShapeDtypeStruct((r, 16 * ch), jnp.float32),
        in_specs=[vmem] * 5,
        out_specs=vmem,
    )(x2_2d, x1_pk, x0_pk, masks, slab)

    # re-interleave the 16 phase planes back into the fine 4Ha x 4Wa image.
    y = (out2d.reshape(n, ha, wa, 2, 2, 2, 2, ch)
         .transpose(0, 1, 3, 5, 2, 4, 6, 7)
         .reshape(n, 4 * ha, 4 * wa, ch))
    return [jnp.transpose(y, (0, 3, 1, 2))]          # back to NCHW


# --------------------------------- parameters ---------------------------------

def init_params(key, feature_layers=(8, 16, 32), out_channel=16, width_mult=1.0):
    f0, f1, f2 = feature_layers
    ch = int(out_channel * width_mult)
    h0, h1 = 2 * f2, 2 * f1                     # expand_ratio = 2
    keys = iter(jax.random.split(key, 32))

    def w1x1(cin, cout):
        return 0.1 * jax.random.normal(next(keys), (cin, cout), jnp.float32)

    def wdw(c):
        return 0.1 * jax.random.normal(next(keys), (3, 3, c), jnp.float32)

    def wup(cin, cout):                          # PyTorch ConvTranspose layout
        return 0.1 * jax.random.normal(next(keys), (cin, cout, 2, 2), jnp.float32)

    def bn(c, eps=1e-5):                         # eval-mode BN -> affine
        k1, k2, k3, k4 = jax.random.split(next(keys), 4)
        gamma = 1.0 + 0.1 * jax.random.normal(k1, (c,), jnp.float32)
        beta = 0.1 * jax.random.normal(k2, (c,), jnp.float32)
        mean = 0.1 * jax.random.normal(k3, (c,), jnp.float32)
        var = 1.0 + 0.1 * jax.random.uniform(k4, (c,), jnp.float32)
        scale = gamma * jax.lax.rsqrt(var + eps)
        return scale, beta - mean * scale

    p = {}
    p["c0_exp_w"] = w1x1(f2, h0); p["c0_exp_scale"], p["c0_exp_bias"] = bn(h0)
    p["c0_dw_w"] = wdw(h0);       p["c0_dw_scale"], p["c0_dw_bias"] = bn(h0)
    p["c0_prj_w"] = w1x1(h0, f1); p["c0_prj_scale"], p["c0_prj_bias"] = bn(f1)
    p["up0_w"] = wup(f1, f1)
    p["c1_exp_w"] = w1x1(f1, h1); p["c1_exp_scale"], p["c1_exp_bias"] = bn(h1)
    p["c1_dw_w"] = wdw(h1);       p["c1_dw_scale"], p["c1_dw_bias"] = bn(h1)
    p["c1_prj_w"] = w1x1(h1, f0); p["c1_prj_scale"], p["c1_prj_bias"] = bn(f0)
    p["up1_w"] = wup(f0, f0)
    p["c2_w"] = w1x1(f0, ch);     p["c2_scale"], p["c2_bias"] = bn(ch)
    return p


# ------------------------------- jnp reference --------------------------------

def fpn_m_reference(params, x_nchw_list):
    """Straightforward NHWC jnp implementation from the raw parameters."""
    x0, x1, x2 = [jnp.transpose(x, (0, 2, 3, 1)) for x in x_nchw_list]
    p = params

    def pw(x, w, s, b, relu6):
        y = jnp.einsum("nhwc,cd->nhwd", x, w) * s + b
        return jnp.clip(y, 0.0, 6.0) if relu6 else y

    def dw(x, w, s, b):
        _, hh, ww, _ = x.shape
        xp = jnp.pad(x, ((0, 0), (1, 1), (1, 1), (0, 0)))
        acc = sum(xp[:, ky:ky + hh, kx:kx + ww, :] * w[ky, kx]
                  for ky in range(3) for kx in range(3))
        return jnp.clip(acc * s + b, 0.0, 6.0)

    def up(x, w):                       # ConvTranspose2d(k=2, s=2, bias=False)
        nb, hh, ww, _ = x.shape
        cout = w.shape[1]
        y = jnp.einsum("nijc,coyx->niyjxo", x, w)
        return y.reshape(nb, 2 * hh, 2 * ww, cout)

    h = pw(x2, p["c0_exp_w"], p["c0_exp_scale"], p["c0_exp_bias"], True)
    h = dw(h, p["c0_dw_w"], p["c0_dw_scale"], p["c0_dw_bias"])
    h = pw(h, p["c0_prj_w"], p["c0_prj_scale"], p["c0_prj_bias"], False)
    h = up(h, p["up0_w"]) + x1
    h = pw(h, p["c1_exp_w"], p["c1_exp_scale"], p["c1_exp_bias"], True)
    h = dw(h, p["c1_dw_w"], p["c1_dw_scale"], p["c1_dw_bias"])
    h = pw(h, p["c1_prj_w"], p["c1_prj_scale"], p["c1_prj_bias"], False)
    h = up(h, p["up1_w"]) + x0
    h = pw(h, p["c2_w"], p["c2_scale"], p["c2_bias"], True)
    return [jnp.transpose(h, (0, 3, 1, 2))]


# ------------------------------------ main ------------------------------------

if __name__ == "__main__":
    key = jax.random.PRNGKey(0)
    kp, k0, k1, k2 = jax.random.split(key, 4)
    params = init_params(kp, feature_layers=(8, 16, 32), out_channel=16,
                         width_mult=1.0)

    N = 2
    # PyTorch-convention NCHW inputs: [x0, x1, x2] pyramid levels.
    x0 = jax.random.normal(k0, (N, 8, 16, 16), jnp.float32)
    x1 = jax.random.normal(k1, (N, 16, 8, 8), jnp.float32)
    x2 = jax.random.normal(k2, (N, 32, 4, 4), jnp.float32)

    # One-off host-side weight packing (outside the jitted forward).
    slab, meta = pack_fpn_params(params)
    fwd = jax.jit(functools.partial(fpn_m_forward, meta=meta))

    out = fwd(slab, [x0, x1, x2])
    out = [jax.block_until_ready(o) for o in out]

    ref = fpn_m_reference(params, [x0, x1, x2])
    assert out[0].shape == (N, 16, 16, 16), out[0].shape
    # Tolerance accommodates the TPU MXU's default reduced-precision f32
    # matmul path: the kernel multiplies BN-folded (and block-diagonalised)
    # weights while the reference applies the BN affine after the raw-weight
    # matmul, so the two paths round their MXU operands differently.
    # Structural errors would be >> 1e-1.
    np.testing.assert_allclose(np.asarray(out[0]), np.asarray(ref[0]),
                               rtol=2e-2, atol=2e-2)
    print("KERNEL_OK")
</pallas_src>

<mosaic_0001>
module attributes {stable_mosaic.version = 11 : i64} {
  func.func @_fpn_fused_kernel(%arg0: memref<32x32xf32, #tpu.memory_space<vmem>>, %arg1: memref<32x64xf32, #tpu.memory_space<vmem>>, %arg2: memref<32x128xf32, #tpu.memory_space<vmem>>, %arg3: memref<9x32x64xf32, #tpu.memory_space<vmem>>, %arg4: memref<552x256xf32, #tpu.memory_space<vmem>>, %arg5: memref<32x256xf32, #tpu.memory_space<vmem>>) attributes {dimension_semantics = [], scalar_prefetch = 0 : i64, scratch_operands = 0 : i64, tpu.core_type = #tpu.core_type<tc>} {
    %c0 = arith.constant 0 : index
    %c0_0 = arith.constant 0 : index
    %c0_1 = arith.constant 0 : index
    %0 = vector.load %arg3[%c0, %c0_0, %c0_1] : memref<9x32x64xf32, #tpu.memory_space<vmem>>, vector<1x32x64xf32>
    %1 = vector.shape_cast %0 : vector<1x32x64xf32> to vector<32x64xf32>
    %c1 = arith.constant 1 : index
    %c0_2 = arith.constant 0 : index
    %c0_3 = arith.constant 0 : index
    %2 = vector.load %arg3[%c1, %c0_2, %c0_3] : memref<9x32x64xf32, #tpu.memory_space<vmem>>, vector<1x32x64xf32>
    %3 = vector.shape_cast %2 : vector<1x32x64xf32> to vector<32x64xf32>
    %c2 = arith.constant 2 : index
    %c0_4 = arith.constant 0 : index
    %c0_5 = arith.constant 0 : index
    %4 = vector.load %arg3[%c2, %c0_4, %c0_5] : memref<9x32x64xf32, #tpu.memory_space<vmem>>, vector<1x32x64xf32>
    %5 = vector.shape_cast %4 : vector<1x32x64xf32> to vector<32x64xf32>
    %c3 = arith.constant 3 : index
    %c0_6 = arith.constant 0 : index
    %c0_7 = arith.constant 0 : index
    %6 = vector.load %arg3[%c3, %c0_6, %c0_7] : memref<9x32x64xf32, #tpu.memory_space<vmem>>, vector<1x32x64xf32>
    %7 = vector.shape_cast %6 : vector<1x32x64xf32> to vector<32x64xf32>
    %c5 = arith.constant 5 : index
    %c0_8 = arith.constant 0 : index
    %c0_9 = arith.constant 0 : index
    %8 = vector.load %arg3[%c5, %c0_8, %c0_9] : memref<9x32x64xf32, #tpu.memory_space<vmem>>, vector<1x32x64xf32>
    %9 = vector.shape_cast %8 : vector<1x32x64xf32> to vector<32x64xf32>
    %c6 = arith.constant 6 : index
    %c0_10 = arith.constant 0 : index
    %c0_11 = arith.constant 0 : index
    %10 = vector.load %arg3[%c6, %c0_10, %c0_11] : memref<9x32x64xf32, #tpu.memory_space<vmem>>, vector<1x32x64xf32>
    %11 = vector.shape_cast %10 : vector<1x32x64xf32> to vector<32x64xf32>
    %c7 = arith.constant 7 : index
    %c0_12 = arith.constant 0 : index
    %c0_13 = arith.constant 0 : index
    %12 = vector.load %arg3[%c7, %c0_12, %c0_13] : memref<9x32x64xf32, #tpu.memory_space<vmem>>, vector<1x32x64xf32>
    %13 = vector.shape_cast %12 : vector<1x32x64xf32> to vector<32x64xf32>
    %c8 = arith.constant 8 : index
    %c0_14 = arith.constant 0 : index
    %c0_15 = arith.constant 0 : index
    %14 = vector.load %arg3[%c8, %c0_14, %c0_15] : memref<9x32x64xf32, #tpu.memory_space<vmem>>, vector<1x32x64xf32>
    %15 = vector.shape_cast %14 : vector<1x32x64xf32> to vector<32x64xf32>
    %16 = vector.extract_strided_slice %1 {offsets = [0, 0], sizes = [32, 32], strides = [1, 1]} : vector<32x64xf32> to vector<32x32xf32>
    %17 = vector.extract_strided_slice %3 {offsets = [0, 0], sizes = [32, 32], strides = [1, 1]} : vector<32x64xf32> to vector<32x32xf32>
    %18 = vector.extract_strided_slice %5 {offsets = [0, 0], sizes = [32, 32], strides = [1, 1]} : vector<32x64xf32> to vector<32x32xf32>
    %19 = vector.extract_strided_slice %7 {offsets = [0, 0], sizes = [32, 32], strides = [1, 1]} : vector<32x64xf32> to vector<32x32xf32>
    %20 = vector.extract_strided_slice %9 {offsets = [0, 0], sizes = [32, 32], strides = [1, 1]} : vector<32x64xf32> to vector<32x32xf32>
    %21 = vector.extract_strided_slice %11 {offsets = [0, 0], sizes = [32, 32], strides = [1, 1]} : vector<32x64xf32> to vector<32x32xf32>
    %22 = vector.extract_strided_slice %13 {offsets = [0, 0], sizes = [32, 32], strides = [1, 1]} : vector<32x64xf32> to vector<32x32xf32>
    %23 = vector.extract_strided_slice %15 {offsets = [0, 0], sizes = [32, 32], strides = [1, 1]} : vector<32x64xf32> to vector<32x32xf32>
    %c0_16 = arith.constant 0 : index
    %c0_17 = arith.constant 0 : index
    %24 = vector.load %arg0[%c0_16, %c0_17] : memref<32x32xf32, #tpu.memory_space<vmem>>, vector<32x32xf32>
    %c0_18 = arith.constant 0 : index
    %c0_19 = arith.constant 0 : index
    %25 = vector.load %arg4[%c0_18, %c0_19] : memref<552x256xf32, #tpu.memory_space<vmem>>, vector<32x64xf32>
    %cst = arith.constant dense<0.000000e+00> : vector<32x64xf32>
    %26 = tpu.matmul %24, %25, %cst {dimension_numbers = #tpu.dot_dimension_numbers<[1], [0], [0], [1], [0, 0, 1, 1], [], []>} : vector<32x32xf32>, vector<32x64xf32>, vector<32x64xf32> -> vector<32x64xf32>
    %c496 = arith.constant 496 : index
    %c0_20 = arith.constant 0 : index
    %27 = vector.load %arg4[%c496, %c0_20] : memref<552x256xf32, #tpu.memory_space<vmem>>, vector<1x64xf32>
    %28 = vector.broadcast %27 : vector<1x64xf32> to vector<32x64xf32>
    %29 = arith.addf %26, %28 : vector<32x64xf32>
    %cst_21 = arith.constant 0.000000e+00 : f32
    %cst_22 = arith.constant 6.000000e+00 : f32
    %30 = vector.broadcast %cst_21 : f32 to vector<32x64xf32>
    %31 = arith.maximumf %30, %29 : vector<32x64xf32>
    %32 = vector.broadcast %cst_22 : f32 to vector<32x64xf32>
    %33 = arith.minimumf %32, %31 : vector<32x64xf32>
    %34 = vector.extract_strided_slice %33 {offsets = [27, 0], sizes = [5, 64], strides = [1, 1]} : vector<32x64xf32> to vector<5x64xf32>
    %35 = vector.extract_strided_slice %33 {offsets = [0, 0], sizes = [27, 64], strides = [1, 1]} : vector<32x64xf32> to vector<27x64xf32>
    %36 = tpu.concatenate %34, %35 in 0 : vector<5x64xf32>, vector<27x64xf32> -> vector<32x64xf32>
    %37 = arith.mulf %36, %1 : vector<32x64xf32>
    %c464 = arith.constant 464 : index
    %c0_23 = arith.constant 0 : index
    %38 = vector.load %arg4[%c464, %c0_23] : memref<552x256xf32, #tpu.memory_space<vmem>>, vector<1x64xf32>
    %39 = vector.broadcast %38 : vector<1x64xf32> to vector<32x64xf32>
    %40 = arith.mulf %37, %39 : vector<32x64xf32>
    %41 = vector.extract_strided_slice %33 {offsets = [28, 0], sizes = [4, 64], strides = [1, 1]} : vector<32x64xf32> to vector<4x64xf32>
    %42 = vector.extract_strided_slice %33 {offsets = [0, 0], sizes = [28, 64], strides = [1, 1]} : vector<32x64xf32> to vector<28x64xf32>
    %43 = tpu.concatenate %41, %42 in 0 : vector<4x64xf32>, vector<28x64xf32> -> vector<32x64xf32>
    %44 = arith.mulf %43, %3 : vector<32x64xf32>
    %c465 = arith.constant 465 : index
    %c0_24 = arith.constant 0 : index
    %45 = vector.load %arg4[%c465, %c0_24] : memref<552x256xf32, #tpu.memory_space<vmem>>, vector<1x64xf32>
    %46 = vector.broadcast %45 : vector<1x64xf32> to vector<32x64xf32>
    %47 = arith.mulf %44, %46 : vector<32x64xf32>
    %48 = arith.addf %40, %47 : vector<32x64xf32>
    %49 = vector.extract_strided_slice %33 {offsets = [29, 0], sizes = [3, 64], strides = [1, 1]} : vector<32x64xf32> to vector<3x64xf32>
    %50 = vector.extract_strided_slice %33 {offsets = [0, 0], sizes = [29, 64], strides = [1, 1]} : vector<32x64xf32> to vector<29x64xf32>
    %51 = tpu.concatenate %49, %50 in 0 : vector<3x64xf32>, vector<29x64xf32> -> vector<32x64xf32>
    %52 = arith.mulf %51, %5 : vector<32x64xf32>
    %c466 = arith.constant 466 : index
    %c0_25 = arith.constant 0 : index
    %53 = vector.load %arg4[%c466, %c0_25] : memref<552x256xf32, #tpu.memory_space<vmem>>, vector<1x64xf32>
    %54 = vector.broadcast %53 : vector<1x64xf32> to vector<32x64xf32>
    %55 = arith.mulf %52, %54 : vector<32x64xf32>
    %56 = arith.addf %48, %55 : vector<32x64xf32>
    %57 = vector.extract_strided_slice %33 {offsets = [31, 0], sizes = [1, 64], strides = [1, 1]} : vector<32x64xf32> to vector<1x64xf32>
    %58 = vector.extract_strided_slice %33 {offsets = [0, 0], sizes = [31, 64], strides = [1, 1]} : vector<32x64xf32> to vector<31x64xf32>
    %59 = tpu.concatenate %57, %58 in 0 : vector<1x64xf32>, vector<31x64xf32> -> vector<32x64xf32>
    %60 = arith.mulf %59, %7 : vector<32x64xf32>
    %c467 = arith.constant 467 : index
    %c0_26 = arith.constant 0 : index
    %61 = vector.load %arg4[%c467, %c0_26] : memref<552x256xf32, #tpu.memory_space<vmem>>, vector<1x64xf32>
    %62 = vector.broadcast %61 : vector<1x64xf32> to vector<32x64xf32>
    %63 = arith.mulf %60, %62 : vector<32x64xf32>
    %64 = arith.addf %56, %63 : vector<32x64xf32>
    %c468 = arith.constant 468 : index
    %c0_27 = arith.constant 0 : index
    %65 = vector.load %arg4[%c468, %c0_27] : memref<552x256xf32, #tpu.memory_space<vmem>>, vector<1x64xf32>
    %66 = vector.broadcast %65 : vector<1x64xf32> to vector<32x64xf32>
    %67 = arith.mulf %33, %66 : vector<32x64xf32>
    %68 = arith.addf %64, %67 : vector<32x64xf32>
    %69 = vector.extract_strided_slice %33 {offsets = [1, 0], sizes = [31, 64], strides = [1, 1]} : vector<32x64xf32> to vector<31x64xf32>
    %70 = vector.extract_strided_slice %33 {offsets = [0, 0], sizes = [1, 64], strides = [1, 1]} : vector<32x64xf32> to vector<1x64xf32>
    %71 = tpu.concatenate %69, %70 in 0 : vector<31x64xf32>, vector<1x64xf32> -> vector<32x64xf32>
    %72 = arith.mulf %71, %9 : vector<32x64xf32>
    %c469 = arith.constant 469 : index
    %c0_28 = arith.constant 0 : index
    %73 = vector.load %arg4[%c469, %c0_28] : memref<552x256xf32, #tpu.memory_space<vmem>>, vector<1x64xf32>
    %74 = vector.broadcast %73 : vector<1x64xf32> to vector<32x64xf32>
    %75 = arith.mulf %72, %74 : vector<32x64xf32>
    %76 = arith.addf %68, %75 : vector<32x64xf32>
    %77 = vector.extract_strided_slice %33 {offsets = [3, 0], sizes = [29, 64], strides = [1, 1]} : vector<32x64xf32> to vector<29x64xf32>
    %78 = vector.extract_strided_slice %33 {offsets = [0, 0], sizes = [3, 64], strides = [1, 1]} : vector<32x64xf32> to vector<3x64xf32>
    %79 = tpu.concatenate %77, %78 in 0 : vector<29x64xf32>, vector<3x64xf32> -> vector<32x64xf32>
    %80 = arith.mulf %79, %11 : vector<32x64xf32>
    %c470 = arith.constant 470 : index
    %c0_29 = arith.constant 0 : index
    %81 = vector.load %arg4[%c470, %c0_29] : memref<552x256xf32, #tpu.memory_space<vmem>>, vector<1x64xf32>
    %82 = vector.broadcast %81 : vector<1x64xf32> to vector<32x64xf32>
    %83 = arith.mulf %80, %82 : vector<32x64xf32>
    %84 = arith.addf %76, %83 : vector<32x64xf32>
    %85 = vector.extract_strided_slice %33 {offsets = [4, 0], sizes = [28, 64], strides = [1, 1]} : vector<32x64xf32> to vector<28x64xf32>
    %86 = vector.extract_strided_slice %33 {offsets = [0, 0], sizes = [4, 64], strides = [1, 1]} : vector<32x64xf32> to vector<4x64xf32>
    %87 = tpu.concatenate %85, %86 in 0 : vector<28x64xf32>, vector<4x64xf32> -> vector<32x64xf32>
    %88 = arith.mulf %87, %13 : vector<32x64xf32>
    %c471 = arith.constant 471 : index
    %c0_30 = arith.constant 0 : index
    %89 = vector.load %arg4[%c471, %c0_30] : memref<552x256xf32, #tpu.memory_space<vmem>>, vector<1x64xf32>
    %90 = vector.broadcast %89 : vector<1x64xf32> to vector<32x64xf32>
    %91 = arith.mulf %88, %90 : vector<32x64xf32>
    %92 = arith.addf %84, %91 : vector<32x64xf32>
    %93 = vector.extract_strided_slice %33 {offsets = [5, 0], sizes = [27, 64], strides = [1, 1]} : vector<32x64xf32> to vector<27x64xf32>
    %94 = vector.extract_strided_slice %33 {offsets = [0, 0], sizes = [5, 64], strides = [1, 1]} : vector<32x64xf32> to vector<5x64xf32>
    %95 = tpu.concatenate %93, %94 in 0 : vector<27x64xf32>, vector<5x64xf32> -> vector<32x64xf32>
    %96 = arith.mulf %95, %15 : vector<32x64xf32>
    %c472 = arith.constant 472 : index
    %c0_31 = arith.constant 0 : index
    %97 = vector.load %arg4[%c472, %c0_31] : memref<552x256xf32, #tpu.memory_space<vmem>>, vector<1x64xf32>
    %98 = vector.broadcast %97 : vector<1x64xf32> to vector<32x64xf32>
    %99 = arith.mulf %96, %98 : vector<32x64xf32>
    %100 = arith.addf %92, %99 : vector<32x64xf32>
    %c504 = arith.constant 504 : index
    %c0_32 = arith.constant 0 : index
    %101 = vector.load %arg4[%c504, %c0_32] : memref<552x256xf32, #tpu.memory_space<vmem>>, vector<1x64xf32>
    %102 = vector.broadcast %101 : vector<1x64xf32> to vector<32x64xf32>
    %103 = arith.addf %100, %102 : vector<32x64xf32>
    %cst_33 = arith.constant 0.000000e+00 : f32
    %cst_34 = arith.constant 6.000000e+00 : f32
    %104 = vector.broadcast %cst_33 : f32 to vector<32x64xf32>
    %105 = arith.maximumf %104, %103 : vector<32x64xf32>
    %106 = vector.broadcast %cst_34 : f32 to vector<32x64xf32>
    %107 = arith.minimumf %106, %105 : vector<32x64xf32>
    %c32 = arith.constant 32 : index
    %c0_35 = arith.constant 0 : index
    %108 = vector.load %arg4[%c32, %c0_35] : memref<552x256xf32, #tpu.memory_space<vmem>>, vector<64x16xf32>
    %cst_36 = arith.constant dense<0.000000e+00> : vector<32x16xf32>
    %109 = tpu.matmul %107, %108, %cst_36 {dimension_numbers = #tpu.dot_dimension_numbers<[1], [0], [0], [1], [0, 0, 1, 1], [], []>} : vector<32x64xf32>, vector<64x16xf32>, vector<32x16xf32> -> vector<32x16xf32>
    %c512 = arith.constant 512 : index
    %c0_37 = arith.constant 0 : index
    %110 = vector.load %arg4[%c512, %c0_37] : memref<552x256xf32, #tpu.memory_space<vmem>>, vector<1x16xf32>
    %111 = vector.broadcast %110 : vector<1x16xf32> to vector<32x16xf32>
    %112 = arith.addf %109, %111 : vector<32x16xf32>
    %c96 = arith.constant 96 : index
    %c0_38 = arith.constant 0 : index
    %113 = vector.load %arg4[%c96, %c0_38] : memref<552x256xf32, #tpu.memory_space<vmem>>, vector<16x64xf32>
    %cst_39 = arith.constant dense<0.000000e+00> : vector<32x64xf32>
    %114 = tpu.matmul %112, %113, %cst_39 {dimension_numbers = #tpu.dot_dimension_numbers<[1], [0], [0], [1], [0, 0, 1, 1], [], []>} : vector<32x16xf32>, vector<16x64xf32>, vector<32x64xf32> -> vector<32x64xf32>
    %c0_40 = arith.constant 0 : index
    %c0_41 = arith.constant 0 : index
    %115 = vector.load %arg1[%c0_40, %c0_41] : memref<32x64xf32, #tpu.memory_space<vmem>>, vector<32x64xf32>
    %116 = arith.addf %114, %115 : vector<32x64xf32>
    %c112 = arith.constant 112 : index
    %c0_42 = arith.constant 0 : index
    %117 = vector.load %arg4[%c112, %c0_42] : memref<552x256xf32, #tpu.memory_space<vmem>>, vector<64x128xf32>
    %cst_43 = arith.constant dense<0.000000e+00> : vector<32x128xf32>
    %118 = tpu.matmul %116, %117, %cst_43 {dimension_numbers = #tpu.dot_dimension_numbers<[1], [0], [0], [1], [0, 0, 1, 1], [], []>} : vector<32x64xf32>, vector<64x128xf32>, vector<32x128xf32> -> vector<32x128xf32>
    %c520 = arith.constant 520 : index
    %c0_44 = arith.constant 0 : index
    %119 = vector.load %arg4[%c520, %c0_44] : memref<552x256xf32, #tpu.memory_space<vmem>>, vector<1x128xf32>
    %120 = vector.broadcast %119 : vector<1x128xf32> to vector<32x128xf32>
    %121 = arith.addf %118, %120 : vector<32x128xf32>
    %cst_45 = arith.constant 0.000000e+00 : f32
    %cst_46 = arith.constant 6.000000e+00 : f32
    %122 = vector.broadcast %cst_45 : f32 to vector<32x128xf32>
    %123 = arith.maximumf %122, %121 : vector<32x128xf32>
    %124 = vector.broadcast %cst_46 : f32 to vector<32x128xf32>
    %125 = arith.minimumf %124, %123 : vector<32x128xf32>
    %126 = vector.extract_strided_slice %125 {offsets = [0, 0], sizes = [32, 32], strides = [1, 1]} : vector<32x128xf32> to vector<32x32xf32>
    %127 = vector.extract_strided_slice %125 {offsets = [0, 32], sizes = [32, 32], strides = [1, 1]} : vector<32x128xf32> to vector<32x32xf32>
    %128 = vector.extract_strided_slice %125 {offsets = [0, 64], sizes = [32, 32], strides = [1, 1]} : vector<32x128xf32> to vector<32x32xf32>
    %129 = vector.extract_strided_slice %125 {offsets = [0, 96], sizes = [32, 32], strides = [1, 1]} : vector<32x128xf32> to vector<32x32xf32>
    %130 = vector.extract_strided_slice %127 {offsets = [31, 0], sizes = [1, 32], strides = [1, 1]} : vector<32x32xf32> to vector<1x32xf32>
    %131 = vector.extract_strided_slice %127 {offsets = [0, 0], sizes = [31, 32], strides = [1, 1]} : vector<32x32xf32> to vector<31x32xf32>
    %132 = tpu.concatenate %130, %131 in 0 : vector<1x32xf32>, vector<31x32xf32> -> vector<32x32xf32>
    %133 = arith.mulf %132, %19 : vector<32x32xf32>
    %134 = vector.extract_strided_slice %126 {offsets = [1, 0], sizes = [31, 32], strides = [1, 1]} : vector<32x32xf32> to vector<31x32xf32>
    %135 = vector.extract_strided_slice %126 {offsets = [0, 0], sizes = [1, 32], strides = [1, 1]} : vector<32x32xf32> to vector<1x32xf32>
    %136 = tpu.concatenate %134, %135 in 0 : vector<31x32xf32>, vector<1x32xf32> -> vector<32x32xf32>
    %137 = arith.mulf %136, %20 : vector<32x32xf32>
    %138 = vector.extract_strided_slice %129 {offsets = [31, 0], sizes = [1, 32], strides = [1, 1]} : vector<32x32xf32> to vector<1x32xf32>
    %139 = vector.extract_strided_slice %129 {offsets = [0, 0], sizes = [31, 32], strides = [1, 1]} : vector<32x32xf32> to vector<31x32xf32>
    %140 = tpu.concatenate %138, %139 in 0 : vector<1x32xf32>, vector<31x32xf32> -> vector<32x32xf32>
    %141 = arith.mulf %140, %19 : vector<32x32xf32>
    %142 = vector.extract_strided_slice %128 {offsets = [1, 0], sizes = [31, 32], strides = [1, 1]} : vector<32x32xf32> to vector<31x32xf32>
    %143 = vector.extract_strided_slice %128 {offsets = [0, 0], sizes = [1, 32], strides = [1, 1]} : vector<32x32xf32> to vector<1x32xf32>
    %144 = tpu.concatenate %142, %143 in 0 : vector<31x32xf32>, vector<1x32xf32> -> vector<32x32xf32>
    %145 = arith.mulf %144, %20 : vector<32x32xf32>
    %146 = vector.extract_strided_slice %128 {offsets = [28, 0], sizes = [4, 32], strides = [1, 1]} : vector<32x32xf32> to vector<4x32xf32>
    %147 = vector.extract_strided_slice %128 {offsets = [0, 0], sizes = [28, 32], strides = [1, 1]} : vector<32x32xf32> to vector<28x32xf32>
    %148 = tpu.concatenate %146, %147 in 0 : vector<4x32xf32>, vector<28x32xf32> -> vector<32x32xf32>
    %149 = arith.mulf %148, %17 : vector<32x32xf32>
    %150 = vector.extract_strided_slice %129 {offsets = [28, 0], sizes = [4, 32], strides = [1, 1]} : vector<32x32xf32> to vector<4x32xf32>
    %151 = vector.extract_strided_slice %129 {offsets = [0, 0], sizes = [28, 32], strides = [1, 1]} : vector<32x32xf32> to vector<28x32xf32>
    %152 = tpu.concatenate %150, %151 in 0 : vector<4x32xf32>, vector<28x32xf32> -> vector<32x32xf32>
    %153 = arith.mulf %152, %17 : vector<32x32xf32>
    %154 = vector.extract_strided_slice %129 {offsets = [27, 0], sizes = [5, 32], strides = [1, 1]} : vector<32x32xf32> to vector<5x32xf32>
    %155 = vector.extract_strided_slice %129 {offsets = [0, 0], sizes = [27, 32], strides = [1, 1]} : vector<32x32xf32> to vector<27x32xf32>
    %156 = tpu.concatenate %154, %155 in 0 : vector<5x32xf32>, vector<27x32xf32> -> vector<32x32xf32>
    %157 = arith.mulf %156, %16 : vector<32x32xf32>
    %158 = vector.extract_strided_slice %128 {offsets = [29, 0], sizes = [3, 32], strides = [1, 1]} : vector<32x32xf32> to vector<3x32xf32>
    %159 = vector.extract_strided_slice %128 {offsets = [0, 0], sizes = [29, 32], strides = [1, 1]} : vector<32x32xf32> to vector<29x32xf32>
    %160 = tpu.concatenate %158, %159 in 0 : vector<3x32xf32>, vector<29x32xf32> -> vector<32x32xf32>
    %161 = arith.mulf %160, %18 : vector<32x32xf32>
    %162 = vector.extract_strided_slice %126 {offsets = [4, 0], sizes = [28, 32], strides = [1, 1]} : vector<32x32xf32> to vector<28x32xf32>
    %163 = vector.extract_strided_slice %126 {offsets = [0, 0], sizes = [4, 32], strides = [1, 1]} : vector<32x32xf32> to vector<4x32xf32>
    %164 = tpu.concatenate %162, %163 in 0 : vector<28x32xf32>, vector<4x32xf32> -> vector<32x32xf32>
    %165 = arith.mulf %164, %22 : vector<32x32xf32>
    %166 = vector.extract_strided_slice %127 {offsets = [4, 0], sizes = [28, 32], strides = [1, 1]} : vector<32x32xf32> to vector<28x32xf32>
    %167 = vector.extract_strided_slice %127 {offsets = [0, 0], sizes = [4, 32], strides = [1, 1]} : vector<32x32xf32> to vector<4x32xf32>
    %168 = tpu.concatenate %166, %167 in 0 : vector<28x32xf32>, vector<4x32xf32> -> vector<32x32xf32>
    %169 = arith.mulf %168, %22 : vector<32x32xf32>
    %170 = vector.extract_strided_slice %127 {offsets = [3, 0], sizes = [29, 32], strides = [1, 1]} : vector<32x32xf32> to vector<29x32xf32>
    %171 = vector.extract_strided_slice %127 {offsets = [0, 0], sizes = [3, 32], strides = [1, 1]} : vector<32x32xf32> to vector<3x32xf32>
    %172 = tpu.concatenate %170, %171 in 0 : vector<29x32xf32>, vector<3x32xf32> -> vector<32x32xf32>
    %173 = arith.mulf %172, %21 : vector<32x32xf32>
    %174 = vector.extract_strided_slice %126 {offsets = [5, 0], sizes = [27, 32], strides = [1, 1]} : vector<32x32xf32> to vector<27x32xf32>
    %175 = vector.extract_strided_slice %126 {offsets = [0, 0], sizes = [5, 32], strides = [1, 1]} : vector<32x32xf32> to vector<5x32xf32>
    %176 = tpu.concatenate %174, %175 in 0 : vector<27x32xf32>, vector<5x32xf32> -> vector<32x32xf32>
    %177 = arith.mulf %176, %23 : vector<32x32xf32>
    %c480 = arith.constant 480 : index
    %c0_47 = arith.constant 0 : index
    %178 = vector.load %arg4[%c480, %c0_47] : memref<552x256xf32, #tpu.memory_space<vmem>>, vector<1x32xf32>
    %179 = vector.shape_cast %178 : vector<1x32xf32> to vector<1x32xf32>
    %180 = vector.broadcast %179 : vector<1x32xf32> to vector<32x32xf32>
    %c481 = arith.constant 481 : index
    %c0_48 = arith.constant 0 : index
    %181 = vector.load %arg4[%c481, %c0_48] : memref<552x256xf32, #tpu.memory_space<vmem>>, vector<1x32xf32>
    %182 = vector.shape_cast %181 : vector<1x32xf32> to vector<1x32xf32>
    %183 = vector.broadcast %182 : vector<1x32xf32> to vector<32x32xf32>
    %c482 = arith.constant 482 : index
    %c0_49 = arith.constant 0 : index
    %184 = vector.load %arg4[%c482, %c0_49] : memref<552x256xf32, #tpu.memory_space<vmem>>, vector<1x32xf32>
    %185 = vector.shape_cast %184 : vector<1x32xf32> to vector<1x32xf32>
    %186 = vector.broadcast %185 : vector<1x32xf32> to vector<32x32xf32>
    %c483 = arith.constant 483 : index
    %c0_50 = arith.constant 0 : index
    %187 = vector.load %arg4[%c483, %c0_50] : memref<552x256xf32, #tpu.memory_space<vmem>>, vector<1x32xf32>
    %188 = vector.shape_cast %187 : vector<1x32xf32> to vector<1x32xf32>
    %189 = vector.broadcast %188 : vector<1x32xf32> to vector<32x32xf32>
    %c484 = arith.constant 484 : index
    %c0_51 = arith.constant 0 : index
    %190 = vector.load %arg4[%c484, %c0_51] : memref<552x256xf32, #tpu.memory_space<vmem>>, vector<1x32xf32>
    %191 = vector.shape_cast %190 : vector<1x32xf32> to vector<1x32xf32>
    %192 = vector.broadcast %191 : vector<1x32xf32> to vector<32x32xf32>
    %c485 = arith.constant 485 : index
    %c0_52 = arith.constant 0 : index
    %193 = vector.load %arg4[%c485, %c0_52] : memref<552x256xf32, #tpu.memory_space<vmem>>, vector<1x32xf32>
    %194 = vector.shape_cast %193 : vector<1x32xf32> to vector<1x32xf32>
    %195 = vector.broadcast %194 : vector<1x32xf32> to vector<32x32xf32>
    %c486 = arith.constant 486 : index
    %c0_53 = arith.constant 0 : index
    %196 = vector.load %arg4[%c486, %c0_53] : memref<552x256xf32, #tpu.memory_space<vmem>>, vector<1x32xf32>
    %197 = vector.shape_cast %196 : vector<1x32xf32> to vector<1x32xf32>
    %198 = vector.broadcast %197 : vector<1x32xf32> to vector<32x32xf32>
    %c487 = arith.constant 487 : index
    %c0_54 = arith.constant 0 : index
    %199 = vector.load %arg4[%c487, %c0_54] : memref<552x256xf32, #tpu.memory_space<vmem>>, vector<1x32xf32>
    %200 = vector.shape_cast %199 : vector<1x32xf32> to vector<1x32xf32>
    %201 = vector.broadcast %200 : vector<1x32xf32> to vector<32x32xf32>
    %c488 = arith.constant 488 : index
    %c0_55 = arith.constant 0 : index
    %202 = vector.load %arg4[%c488, %c0_55] : memref<552x256xf32, #tpu.memory_space<vmem>>, vector<1x32xf32>
    %203 = vector.shape_cast %202 : vector<1x32xf32> to vector<1x32xf32>
    %204 = vector.broadcast %203 : vector<1x32xf32> to vector<32x32xf32>
    %205 = arith.mulf %157, %180 : vector<32x32xf32>
    %206 = arith.mulf %149, %183 : vector<32x32xf32>
    %207 = arith.addf %205, %206 : vector<32x32xf32>
    %208 = arith.mulf %153, %186 : vector<32x32xf32>
    %209 = arith.addf %207, %208 : vector<32x32xf32>
    %210 = arith.mulf %133, %189 : vector<32x32xf32>
    %211 = arith.addf %209, %210 : vector<32x32xf32>
    %212 = arith.mulf %126, %192 : vector<32x32xf32>
    %213 = arith.addf %211, %212 : vector<32x32xf32>
    %214 = arith.mulf %127, %195 : vector<32x32xf32>
    %215 = arith.addf %213, %214 : vector<32x32xf32>
    %216 = arith.mulf %141, %198 : vector<32x32xf32>
    %217 = arith.addf %215, %216 : vector<32x32xf32>
    %218 = arith.mulf %128, %201 : vector<32x32xf32>
    %219 = arith.addf %217, %218 : vector<32x32xf32>
    %220 = arith.mulf %129, %204 : vector<32x32xf32>
    %221 = arith.addf %219, %220 : vector<32x32xf32>
    %222 = arith.mulf %149, %180 : vector<32x32xf32>
    %223 = arith.mulf %153, %183 : vector<32x32xf32>
    %224 = arith.addf %222, %223 : vector<32x32xf32>
    %225 = arith.mulf %161, %186 : vector<32x32xf32>
    %226 = arith.addf %224, %225 : vector<32x32xf32>
    %227 = arith.mulf %126, %189 : vector<32x32xf32>
    %228 = arith.addf %226, %227 : vector<32x32xf32>
    %229 = arith.mulf %127, %192 : vector<32x32xf32>
    %230 = arith.addf %228, %229 : vector<32x32xf32>
    %231 = arith.mulf %137, %195 : vector<32x32xf32>
    %232 = arith.addf %230, %231 : vector<32x32xf32>
    %233 = arith.mulf %128, %198 : vector<32x32xf32>
    %234 = arith.addf %232, %233 : vector<32x32xf32>
    %235 = arith.mulf %129, %201 : vector<32x32xf32>
    %236 = arith.addf %234, %235 : vector<32x32xf32>
    %237 = arith.mulf %145, %204 : vector<32x32xf32>
    %238 = arith.addf %236, %237 : vector<32x32xf32>
    %239 = arith.mulf %133, %180 : vector<32x32xf32>
    %240 = arith.mulf %126, %183 : vector<32x32xf32>
    %241 = arith.addf %239, %240 : vector<32x32xf32>
    %242 = arith.mulf %127, %186 : vector<32x32xf32>
    %243 = arith.addf %241, %242 : vector<32x32xf32>
    %244 = arith.mulf %141, %189 : vector<32x32xf32>
    %245 = arith.addf %243, %244 : vector<32x32xf32>
    %246 = arith.mulf %128, %192 : vector<32x32xf32>
    %247 = arith.addf %245, %246 : vector<32x32xf32>
    %248 = arith.mulf %129, %195 : vector<32x32xf32>
    %249 = arith.addf %247, %248 : vector<32x32xf32>
    %250 = arith.mulf %173, %198 : vector<32x32xf32>
    %251 = arith.addf %249, %250 : vector<32x32xf32>
    %252 = arith.mulf %165, %201 : vector<32x32xf32>
    %253 = arith.addf %251, %252 : vector<32x32xf32>
    %254 = arith.mulf %169, %204 : vector<32x32xf32>
    %255 = arith.addf %253, %254 : vector<32x32xf32>
    %256 = arith.mulf %126, %180 : vector<32x32xf32>
    %257 = arith.mulf %127, %183 : vector<32x32xf32>
    %258 = arith.addf %256, %257 : vector<32x32xf32>
    %259 = arith.mulf %137, %186 : vector<32x32xf32>
    %260 = arith.addf %258, %259 : vector<32x32xf32>
    %261 = arith.mulf %128, %189 : vector<32x32xf32>
    %262 = arith.addf %260, %261 : vector<32x32xf32>
    %263 = arith.mulf %129, %192 : vector<32x32xf32>
    %264 = arith.addf %262, %263 : vector<32x32xf32>
    %265 = arith.mulf %145, %195 : vector<32x32xf32>
    %266 = arith.addf %264, %265 : vector<32x32xf32>
    %267 = arith.mulf %165, %198 : vector<32x32xf32>
    %268 = arith.addf %266, %267 : vector<32x32xf32>
    %269 = arith.mulf %169, %201 : vector<32x32xf32>
    %270 = arith.addf %268, %269 : vector<32x32xf32>
    %271 = arith.mulf %177, %204 : vector<32x32xf32>
    %272 = arith.addf %270, %271 : vector<32x32xf32>
    %273 = tpu.concatenate %221, %238, %255, %272 in 1 : vector<32x32xf32>, vector<32x32xf32>, vector<32x32xf32>, vector<32x32xf32> -> vector<32x128xf32>
    %c528 = arith.constant 528 : index
    %c0_56 = arith.constant 0 : index
    %274 = vector.load %arg4[%c528, %c0_56] : memref<552x256xf32, #tpu.memory_space<vmem>>, vector<1x128xf32>
    %275 = vector.broadcast %274 : vector<1x128xf32> to vector<32x128xf32>
    %276 = arith.addf %273, %275 : vector<32x128xf32>
    %cst_57 = arith.constant 0.000000e+00 : f32
    %cst_58 = arith.constant 6.000000e+00 : f32
    %277 = vector.broadcast %cst_57 : f32 to vector<32x128xf32>
    %278 = arith.maximumf %277, %276 : vector<32x128xf32>
    %279 = vector.broadcast %cst_58 : f32 to vector<32x128xf32>
    %280 = arith.minimumf %279, %278 : vector<32x128xf32>
    %c176 = arith.constant 176 : index
    %c0_59 = arith.constant 0 : index
    %281 = vector.load %arg4[%c176, %c0_59] : memref<552x256xf32, #tpu.memory_space<vmem>>, vector<128x32xf32>
    %cst_60 = arith.constant dense<0.000000e+00> : vector<32x32xf32>
    %282 = tpu.matmul %280, %281, %cst_60 {dimension_numbers = #tpu.dot_dimension_numbers<[1], [0], [0], [1], [0, 0, 1, 1], [], []>} : vector<32x128xf32>, vector<128x32xf32>, vector<32x32xf32> -> vector<32x32xf32>
    %c536 = arith.constant 536 : index
    %c0_61 = arith.constant 0 : index
    %283 = vector.load %arg4[%c536, %c0_61] : memref<552x256xf32, #tpu.memory_space<vmem>>, vector<1x32xf32>
    %284 = vector.broadcast %283 : vector<1x32xf32> to vector<32x32xf32>
    %285 = arith.addf %282, %284 : vector<32x32xf32>
    %c304 = arith.constant 304 : index
    %c0_62 = arith.constant 0 : index
    %286 = vector.load %arg4[%c304, %c0_62] : memref<552x256xf32, #tpu.memory_space<vmem>>, vector<32x128xf32>
    %cst_63 = arith.constant dense<0.000000e+00> : vector<32x128xf32>
    %287 = tpu.matmul %285, %286, %cst_63 {dimension_numbers = #tpu.dot_dimension_numbers<[1], [0], [0], [1], [0, 0, 1, 1], [], []>} : vector<32x32xf32>, vector<32x128xf32>, vector<32x128xf32> -> vector<32x128xf32>
    %c0_64 = arith.constant 0 : index
    %c0_65 = arith.constant 0 : index
    %288 = vector.load %arg2[%c0_64, %c0_65] : memref<32x128xf32, #tpu.memory_space<vmem>>, vector<32x128xf32>
    %289 = arith.addf %287, %288 : vector<32x128xf32>
    %c336 = arith.constant 336 : index
    %c0_66 = arith.constant 0 : index
    %290 = vector.load %arg4[%c336, %c0_66] : memref<552x256xf32, #tpu.memory_space<vmem>>, vector<128x256xf32>
    %cst_67 = arith.constant dense<0.000000e+00> : vector<32x256xf32>
    %291 = tpu.matmul %289, %290, %cst_67 {dimension_numbers = #tpu.dot_dimension_numbers<[1], [0], [0], [1], [0, 0, 1, 1], [], []>} : vector<32x128xf32>, vector<128x256xf32>, vector<32x256xf32> -> vector<32x256xf32>
    %c544 = arith.constant 544 : index
    %c0_68 = arith.constant 0 : index
    %292 = vector.load %arg4[%c544, %c0_68] : memref<552x256xf32, #tpu.memory_space<vmem>>, vector<1x256xf32>
    %293 = vector.broadcast %292 : vector<1x256xf32> to vector<32x256xf32>
    %294 = arith.addf %291, %293 : vector<32x256xf32>
    %cst_69 = arith.constant 0.000000e+00 : f32
    %cst_70 = arith.constant 6.000000e+00 : f32
    %295 = vector.broadcast %cst_69 : f32 to vector<32x256xf32>
    %296 = arith.maximumf %295, %294 : vector<32x256xf32>
    %297 = vector.broadcast %cst_70 : f32 to vector<32x256xf32>
    %298 = arith.minimumf %297, %296 : vector<32x256xf32>
    %c0_71 = arith.constant 0 : index
    %c0_72 = arith.constant 0 : index
    %299 = vector.load %arg5[%c0_71, %c0_72] : memref<32x256xf32, #tpu.memory_space<vmem>>, vector<32x256xf32>
    tpu.vector_store %arg5[%c0_71, %c0_72], %298 {strides = array<i32>} : memref<32x256xf32, #tpu.memory_space<vmem>>, vector<32x256xf32>,
    return
  }
}

</mosaic_0001>

<llo_original>
// kernel: fpn_m_forward.1
$region0: #{fpn_m_forward.1}
  #allocation0 [shape = 'u32[]', space=smem, size = 0x4, offset = 0x4, fixed_abs, tag = 'smem constant byte address 0x4 - core index']
  #allocation1 [shape = 'u32[144,128]{1,0:T(1,128)}', space=vmem, size = 0x12000, scoped, tag = 'internal scratch']
  %s0 = inlined_call_operand.vmem [shape: f32[32,32], index: 0, kind: input, shape index: {}]
  %s1 = inlined_call_operand.vmem [shape: f32[32,64], index: 1, kind: input, shape index: {}]
  %s2 = inlined_call_operand.vmem [shape: f32[32,128], index: 2, kind: input, shape index: {}]
  %s3 = inlined_call_operand.vmem [shape: f32[9,32,64], index: 3, kind: input, shape index: {}]
  %s4 = inlined_call_operand.vmem [shape: f32[552,256], index: 4, kind: input, shape index: {}]
  %s5 = inlined_call_operand.vmem [shape: f32[32,256], index: 5, kind: output, shape index: {}]
  %s6 = sld [smem:[#allocation0]]
  $region30: #{fpn_m_forward.1} parent=0
    _
  %s8 = ssub.s32 1, %s6
  %s9 = scalar_select 0, %s8, %s6
  // Predicated region
  $region2: #{fpn_m_forward.1} parent=0 // pred_check
    _
  $region3: #{fpn_m_forward.1} parent=0 // pred_check_branch
    %11 = sbr.rel (0) target = $region5
  $region4: #{fpn_m_forward.1} parent=0 // pred_region
    _
  $region5: #{fpn_m_forward.1} parent=0 // pred_fallthru
    _
  // Predicated region
  $region6: #{fpn_m_forward.1} parent=0 // pred_check
    _
  $region7: #{fpn_m_forward.1} parent=0 // pred_check_branch
    %13 = sbr.rel (0) target = $region9
  $region8: #{fpn_m_forward.1} parent=0 // pred_region
    _
  $region9: #{fpn_m_forward.1} parent=0 // pred_fallthru
    _
  // Predicated region
  $region10: #{fpn_m_forward.1} parent=0 // pred_check
    _
  $region11: #{fpn_m_forward.1} parent=0 // pred_check_branch
    %15 = sbr.rel (0) target = $region13
  $region12: #{fpn_m_forward.1} parent=0 // pred_region
    _
  $region13: #{fpn_m_forward.1} parent=0 // pred_fallthru
    _
  // Predicated region
  $region14: #{fpn_m_forward.1} parent=0 // pred_check
    _
  $region15: #{fpn_m_forward.1} parent=0 // pred_check_branch
    %17 = sbr.rel (0) target = $region17
  $region16: #{fpn_m_forward.1} parent=0 // pred_region
    _
  $region17: #{fpn_m_forward.1} parent=0 // pred_fallthru
    _
  // Predicated region
  $region18: #{fpn_m_forward.1} parent=0 // pred_check
    _
  $region19: #{fpn_m_forward.1} parent=0 // pred_check_branch
    %19 = sbr.rel (0) target = $region21
  $region20: #{fpn_m_forward.1} parent=0 // pred_region
    _
  $region21: #{fpn_m_forward.1} parent=0 // pred_fallthru
    _
  %v20 = vld [vmem:[%s3] sm:$0xff]
  %v21 = vld [vmem:[%s3 + $0x8] sm:$0xff]
  %v22 = vld [vmem:[%s3 + $0x10] sm:$0xff]
  %v23 = vld [vmem:[%s3 + $0x18] sm:$0xff]
  %s24 = scalar_lea.vmem %s3, 32
  %v25 = vld [vmem:[%s24] sm:$0xff]
  %v26 = vld [vmem:[%s24 + $0x8] sm:$0xff]
  %v27 = vld [vmem:[%s24 + $0x10] sm:$0xff]
  %v28 = vld [vmem:[%s24 + $0x18] sm:$0xff]
  %s29 = scalar_lea.vmem %s3, 64
  %v30 = vld [vmem:[%s29] sm:$0xff]
  %v31 = vld [vmem:[%s29 + $0x8] sm:$0xff]
  %v32 = vld [vmem:[%s29 + $0x10] sm:$0xff]
  %v33 = vld [vmem:[%s29 + $0x18] sm:$0xff]
  %s34 = scalar_lea.vmem %s3, 96
  %v35 = vld [vmem:[%s34] sm:$0xff]
  %v36 = vld [vmem:[%s34 + $0x8] sm:$0xff]
  %v37 = vld [vmem:[%s34 + $0x10] sm:$0xff]
  %v38 = vld [vmem:[%s34 + $0x18] sm:$0xff]
  %s39 = scalar_lea.vmem %s3, 160
  %v40 = vld [vmem:[%s39] sm:$0xff]
  %v41 = vld [vmem:[%s39 + $0x8] sm:$0xff]
  %v42 = vld [vmem:[%s39 + $0x10] sm:$0xff]
  %v43 = vld [vmem:[%s39 + $0x18] sm:$0xff]
  %s44 = scalar_lea.vmem %s3, 192
  %v45 = vld [vmem:[%s44] sm:$0xff]
  %v46 = vld [vmem:[%s44 + $0x8] sm:$0xff]
  %v47 = vld [vmem:[%s44 + $0x10] sm:$0xff]
  %v48 = vld [vmem:[%s44 + $0x18] sm:$0xff]
  %s49 = scalar_lea.vmem %s3, 224
  %v50 = vld [vmem:[%s49] sm:$0xff]
  %v51 = vld [vmem:[%s49 + $0x8] sm:$0xff]
  %v52 = vld [vmem:[%s49 + $0x10] sm:$0xff]
  %v53 = vld [vmem:[%s49 + $0x18] sm:$0xff]
  %s54 = scalar_lea.vmem %s3, 256
  %v55 = vld [vmem:[%s54] sm:$0xff]
  %v56 = vld [vmem:[%s54 + $0x8] sm:$0xff]
  %v57 = vld [vmem:[%s54 + $0x10] sm:$0xff]
  %v58 = vld [vmem:[%s54 + $0x18] sm:$0xff]
  %v59 = vld [vmem:[%s0] sm:$0xff]
  %v60 = vld [vmem:[%s0 + $0x8] sm:$0xff]
  %v61 = vld [vmem:[%s0 + $0x10] sm:$0xff]
  %v62 = vld [vmem:[%s0 + $0x18] sm:$0xff]
  %v63 = vld [vmem:[%s4] sm:$0xff]
  %v64 = vld [vmem:[%s4 + $0x10] sm:$0xff]
  %v65 = vld [vmem:[%s4 + $0x20] sm:$0xff]
  %v66 = vld [vmem:[%s4 + $0x30] sm:$0xff]
  %v67 = vld [vmem:[%s4 + $0x3e0] ss:$0 sm:$0xff]
  %vm68 = vcmask 261120
  %v70 = vsel %vm68, %v59, 0
  %v73 = vsel %vm68, %v60, 0
  %v76 = vsel %vm68, %v61, 0
  %v79 = vsel %vm68, %v62, 0
  %81 = vmatprep.subr.mxu0 0.0
  %82 = vmatpush1.msra.mxu0 %v63
  %83 = vmatprep.subr.mxu0 0.0
  %84 = vmatpush1.msra.mxu0 %v64
  %85 = vmatprep.subr.mxu0 0.0
  %86 = vmatpush1.msra.mxu0 %v65
  %87 = vmatprep.subr.mxu0 0.0
  %88 = vmatpush1.msra.mxu0 %v66
  %89 = vmatprep.subr.mxu0 0.0
  %90 = vmatpush1.msra.mxu0 0.0
  %91 = vmatprep.subr.mxu0 0.0
  %92 = vmatpush1.msra.mxu0 0.0
  %93 = vmatprep.subr.mxu0 0.0
  %94 = vmatpush1.msra.mxu0 0.0
  %95 = vmatprep.subr.mxu0 0.0
  %96 = vmatpush1.msra.mxu0 0.0
  %97 = vmatprep.subr.mxu0 0.0
  %98 = vmatpush1.msra.mxu0 0.0
  %99 = vmatprep.subr.mxu0 0.0
  %100 = vmatpush1.msra.mxu0 0.0
  %101 = vmatprep.subr.mxu0 0.0
  %102 = vmatpush1.msra.mxu0 0.0
  %103 = vmatprep.subr.mxu0 0.0
  %104 = vmatpush1.msra.mxu0 0.0
  %105 = vmatprep.subr.mxu0 0.0
  %106 = vmatpush1.msra.mxu0 0.0
  %107 = vmatprep.subr.mxu0 0.0
  %108 = vmatpush1.msra.mxu0 0.0
  %109 = vmatprep.subr.mxu0 0.0
  %110 = vmatpush1.msra.mxu0 0.0
  %111 = vmatprep.subr.mxu0 0.0
  %112 = vmatpush1.msra.mxu0 0.0
  %113 = vmatprep.subr.mxu0 0.0
  %114 = vmatpush1.msra.mxu0 0.0
  %115 = vmatprep.subr.mxu0 0.0
  %116 = vmatpush1.msra.mxu0 0.0
  %117 = vmatprep.subr.mxu0 0.0
  %118 = vmatpush1.msra.mxu0 0.0
  %119 = vmatprep.subr.mxu0 0.0
  %120 = vmatpush1.msra.mxu0 0.0
  %121 = vmatprep.subr.mxu0 0.0
  %122 = vmatpush1.msra.mxu0 0.0
  %123 = vmatprep.subr.mxu0 0.0
  %124 = vmatpush1.msra.mxu0 0.0
  %125 = vmatprep.subr.mxu0 0.0
  %126 = vmatpush1.msra.mxu0 0.0
  %127 = vmatprep.subr.mxu0 0.0
  %128 = vmatpush1.msra.mxu0 0.0
  %129 = vmatprep.subr.mxu0 0.0
  %130 = vmatpush1.msra.mxu0 0.0
  %131 = vmatprep.subr.mxu0 0.0
  %132 = vmatpush1.msra.mxu0 0.0
  %133 = vmatprep.subr.mxu0 0.0
  %134 = vmatpush1.msra.mxu0 0.0
  %135 = vmatprep.subr.mxu0 0.0
  %136 = vmatpush1.msra.mxu0 0.0
  %137 = vmatprep.subr.mxu0 0.0
  %138 = vmatpush1.msra.mxu0 0.0
  %139 = vmatprep.subr.mxu0 0.0
  %140 = vmatpush1.msra.mxu0 0.0
  %141 = vmatprep.subr.mxu0 0.0
  %142 = vmatpush1.msra.mxu0 0.0
  %143 = vmatprep.subr.mxu0 0.0
  %144 = vmatpush1.msra.mxu0 0.0
  %145 = vmatprep.mubr.f32.mxu0 0.0
  %146 = vmatmul.mubr.f32.gmra.mrb[0].mxu0 %v70
  %v147 = vpop.f32.mrb[0].mxu0
  %v148 = vadd.f32 %v67, %v147
  %v149 = vpop.f32.mrb[0].mxu0
  %150 = vmatprep.mubr.f32.mxu0 0.0
  %151 = vmatmul.mubr.f32.gmra.mrb[0].mxu0 %v73
  %v152 = vpop.f32.mrb[0].mxu0
  %v153 = vadd.f32 %v67, %v152
  %v154 = vpop.f32.mrb[0].mxu0
  %155 = vmatprep.mubr.f32.mxu0 0.0
  %156 = vmatmul.mubr.f32.gmra.mrb[0].mxu0 %v76
  %v157 = vpop.f32.mrb[0].mxu0
  %v158 = vadd.f32 %v67, %v157
  %v159 = vpop.f32.mrb[0].mxu0
  %160 = vmatprep.mubr.f32.mxu0 0.0
  %161 = vmatmul.mubr.f32.gmra.mrb[0].mxu0 %v79
  %v162 = vpop.f32.mrb[0].mxu0
  %v163 = vadd.f32 %v67, %v162
  %v164 = vpop.f32.mrb[0].mxu0
  %165 = vdwg.mxu0
  %v166 = vmax.f32 %v148, 0.0
  %v167 = vmax.f32 %v153, 0.0
  %v168 = vmax.f32 %v158, 0.0
  %v169 = vmax.f32 %v163, 0.0
  %v170 = vmin.f32 %v166, 6.0
  %v171 = vmin.f32 %v167, 6.0
  %v172 = vmin.f32 %v168, 6.0
  %v173 = vmin.f32 %v169, 6.0
  %v175 = vrot.slane %v173, 3
  %vm180 = vcmask 1044480
  %v181 = vrot.slane %v170, 3
  %v182 = vrot.slane %v171, 3
  %v183 = vsel %vm180, %v181, %v182
  %v184 = vrot.slane %v172, 3
  %v185 = vsel %vm180, %v182, %v184
  %v186 = vsel %vm180, %v184, %v175
  %v191 = vsel %vm180, %v175, %v181
  %v192 = vmul.f32 %v191, %v20
  %v193 = vmul.f32 %v183, %v21
  %v194 = vmul.f32 %v185, %v22
  %v195 = vmul.f32 %v186, %v23
  %v196 = vld [vmem:[%s4 + $0x3a0] ss:$0 sm:$0xff]
  %v197 = vmul.f32 %v192, %v196
  %v198 = vmul.f32 %v193, %v196
  %v199 = vmul.f32 %v194, %v196
  %v200 = vmul.f32 %v195, %v196
  %v201 = vrot.slane %v173, 4
  %vm203 = vcmask 1043456
  %v204 = vrot.slane %v170, 4
  %v205 = vrot.slane %v171, 4
  %v206 = vsel %vm203, %v204, %v205
  %v207 = vrot.slane %v172, 4
  %v208 = vsel %vm203, %v205, %v207
  %v209 = vsel %vm203, %v207, %v201
  %v214 = vsel %vm203, %v201, %v204
  %v215 = vmul.f32 %v214, %v25
  %v216 = vmul.f32 %v206, %v26
  %v217 = vmul.f32 %v208, %v27
  %v218 = vmul.f32 %v209, %v28
  %v219 = vld [vmem:[%s4 + $0x3a1] ss:$0 sm:$0xff]
  %v220 = vmul.f32 %v215, %v219
  %v221 = vmul.f32 %v216, %v219
  %v222 = vmul.f32 %v217, %v219
  %v223 = vmul.f32 %v218, %v219
  %v224 = vadd.f32 %v197, %v220
  %v225 = vadd.f32 %v198, %v221
  %v226 = vadd.f32 %v199, %v222
  %v227 = vadd.f32 %v200, %v223
  %v228 = vrot.slane %v173, 5
  %vm230 = vcmask 1042432
  %v231 = vrot.slane %v170, 5
  %v232 = vrot.slane %v171, 5
  %v233 = vsel %vm230, %v231, %v232
  %v234 = vrot.slane %v172, 5
  %v235 = vsel %vm230, %v232, %v234
  %v236 = vsel %vm230, %v234, %v228
  %v241 = vsel %vm230, %v228, %v231
  %v242 = vmul.f32 %v241, %v30
  %v243 = vmul.f32 %v233, %v31
  %v244 = vmul.f32 %v235, %v32
  %v245 = vmul.f32 %v236, %v33
  %v246 = vld [vmem:[%s4 + $0x3a2] ss:$0 sm:$0xff]
  %v247 = vmul.f32 %v242, %v246
  %v248 = vmul.f32 %v243, %v246
  %v249 = vmul.f32 %v244, %v246
  %v250 = vmul.f32 %v245, %v246
  %v251 = vadd.f32 %v224, %v247
  %v252 = vadd.f32 %v225, %v248
  %v253 = vadd.f32 %v226, %v249
  %v254 = vadd.f32 %v227, %v250
  %v255 = vrot.slane %v173, 7
  %vm257 = vcmask 1040384
  %v258 = vrot.slane %v170, 7
  %v259 = vrot.slane %v171, 7
  %v260 = vsel %vm257, %v258, %v259
  %v261 = vrot.slane %v172, 7
  %v262 = vsel %vm257, %v259, %v261
  %v263 = vsel %vm257, %v261, %v255
  %v268 = vsel %vm257, %v255, %v258
  %v269 = vmul.f32 %v268, %v35
  %v270 = vmul.f32 %v260, %v36
  %v271 = vmul.f32 %v262, %v37
  %v272 = vmul.f32 %v263, %v38
  %v273 = vld [vmem:[%s4 + $0x3a3] ss:$0 sm:$0xff]
  %v274 = vmul.f32 %v269, %v273
  %v275 = vmul.f32 %v270, %v273
  %v276 = vmul.f32 %v271, %v273
  %v277 = vmul.f32 %v272, %v273
  %v278 = vadd.f32 %v251, %v274
  %v279 = vadd.f32 %v252, %v275
  %v280 = vadd.f32 %v253, %v276
  %v281 = vadd.f32 %v254, %v277
  %v282 = vld [vmem:[%s4 + $0x3a4] ss:$0 sm:$0xff]
  %v283 = vmul.f32 %v170, %v282
  %v284 = vmul.f32 %v171, %v282
  %v285 = vmul.f32 %v172, %v282
  %v286 = vmul.f32 %v173, %v282
  %v287 = vadd.f32 %v278, %v283
  %v288 = vadd.f32 %v279, %v284
  %v289 = vadd.f32 %v280, %v285
  %v290 = vadd.f32 %v281, %v286
  %vm291 = vcmask 1046528
  %v292 = vrot.slane %v170, 1
  %v293 = vrot.slane %v171, 1
  %v294 = vsel %vm291, %v292, %v293
  %v295 = vrot.slane %v172, 1
  %v296 = vsel %vm291, %v293, %v295
  %v297 = vrot.slane %v173, 1
  %v298 = vsel %vm291, %v295, %v297
  %v304 = vsel %vm291, %v297, %v292
  %v305 = vmul.f32 %v294, %v40
  %v306 = vmul.f32 %v296, %v41
  %v307 = vmul.f32 %v298, %v42
  %v308 = vmul.f32 %v304, %v43
  %v309 = vld [vmem:[%s4 + $0x3a5] ss:$0 sm:$0xff]
  %v310 = vmul.f32 %v305, %v309
  %v311 = vmul.f32 %v306, %v309
  %v312 = vmul.f32 %v307, %v309
  %v313 = vmul.f32 %v308, %v309
  %v314 = vadd.f32 %v287, %v310
  %v315 = vadd.f32 %v288, %v311
  %v316 = vadd.f32 %v289, %v312
  %v317 = vadd.f32 %v290, %v313
  %v318 = vmul.f32 %v183, %v45
  %v319 = vmul.f32 %v185, %v46
  %v320 = vmul.f32 %v186, %v47
  %v321 = vmul.f32 %v191, %v48
  %v322 = vld [vmem:[%s4 + $0x3a6] ss:$0 sm:$0xff]
  %v323 = vmul.f32 %v318, %v322
  %v324 = vmul.f32 %v319, %v322
  %v325 = vmul.f32 %v320, %v322
  %v326 = vmul.f32 %v321, %v322
  %v327 = vadd.f32 %v314, %v323
  %v328 = vadd.f32 %v315, %v324
  %v329 = vadd.f32 %v316, %v325
  %v330 = vadd.f32 %v317, %v326
  %v331 = vmul.f32 %v206, %v50
  %v332 = vmul.f32 %v208, %v51
  %v333 = vmul.f32 %v209, %v52
  %v334 = vmul.f32 %v214, %v53
  %v335 = vld [vmem:[%s4 + $0x3a7] ss:$0 sm:$0xff]
  %v336 = vmul.f32 %v331, %v335
  %v337 = vmul.f32 %v332, %v335
  %v338 = vmul.f32 %v333, %v335
  %v339 = vmul.f32 %v334, %v335
  %v340 = vadd.f32 %v327, %v336
  %v341 = vadd.f32 %v328, %v337
  %v342 = vadd.f32 %v329, %v338
  %v343 = vadd.f32 %v330, %v339
  %v344 = vmul.f32 %v233, %v55
  %v345 = vmul.f32 %v235, %v56
  %v346 = vmul.f32 %v236, %v57
  %v347 = vmul.f32 %v241, %v58
  %v348 = vld [vmem:[%s4 + $0x3b0] ss:$0 sm:$0xff]
  %v349 = vmul.f32 %v344, %v348
  %v350 = vmul.f32 %v345, %v348
  %v351 = vmul.f32 %v346, %v348
  %v352 = vmul.f32 %v347, %v348
  %v353 = vadd.f32 %v340, %v349
  %v354 = vadd.f32 %v341, %v350
  %v355 = vadd.f32 %v342, %v351
  %v356 = vadd.f32 %v343, %v352
  %v357 = vld [vmem:[%s4 + $0x3f0] ss:$0 sm:$0xff]
  %v358 = vadd.f32 %v353, %v357
  %v359 = vadd.f32 %v354, %v357
  %v360 = vadd.f32 %v355, %v357
  %v361 = vadd.f32 %v356, %v357
  %v362 = vmax.f32 %v358, 0.0
  %v363 = vmax.f32 %v359, 0.0
  %v364 = vmax.f32 %v360, 0.0
  %v365 = vmax.f32 %v361, 0.0
  %v366 = vmin.f32 %v362, 6.0
  %v367 = vmin.f32 %v363, 6.0
  %v368 = vmin.f32 %v364, 6.0
  %v369 = vmin.f32 %v365, 6.0
  %v370 = vld [vmem:[%s4 + $0x40] sm:$0xff]
  %v371 = vld [vmem:[%s4 + $0x50] sm:$0xff]
  %v372 = vld [vmem:[%s4 + $0x60] sm:$0xff]
  %v373 = vld [vmem:[%s4 + $0x70] sm:$0xff]
  %v374 = vld [vmem:[%s4 + $0x80] sm:$0xff]
  %v375 = vld [vmem:[%s4 + $0x90] sm:$0xff]
  %v376 = vld [vmem:[%s4 + $0xa0] sm:$0xff]
  %v377 = vld [vmem:[%s4 + $0xb0] sm:$0xff]
  %v378 = vld [vmem:[%s4 + $0x400] ss:$0 sm:$0xff]
  %vm379 = vcmask 523264
  %v381 = vsel %vm379, %v366, 0
  %v384 = vsel %vm379, %v367, 0
  %v387 = vsel %vm379, %v368, 0
  %v390 = vsel %vm379, %v369, 0
  %392 = vmatprep.subr.mxu0 0.0
  %393 = vmatpush1.msra.mxu0 %v370
  %394 = vmatprep.subr.mxu0 0.0
  %395 = vmatpush1.msra.mxu0 %v371
  %396 = vmatprep.subr.mxu0 0.0
  %397 = vmatpush1.msra.mxu0 %v372
  %398 = vmatprep.subr.mxu0 0.0
  %399 = vmatpush1.msra.mxu0 %v373
  %400 = vmatprep.subr.mxu0 0.0
  %401 = vmatpush1.msra.mxu0 %v374
  %402 = vmatprep.subr.mxu0 0.0
  %403 = vmatpush1.msra.mxu0 %v375
  %404 = vmatprep.subr.mxu0 0.0
  %405 = vmatpush1.msra.mxu0 %v376
  %406 = vmatprep.subr.mxu0 0.0
  %407 = vmatpush1.msra.mxu0 %v377
  %408 = vmatprep.subr.mxu0 0.0
  %409 = vmatpush1.msra.mxu0 0.0
  %410 = vmatprep.subr.mxu0 0.0
  %411 = vmatpush1.msra.mxu0 0.0
  %412 = vmatprep.subr.mxu0 0.0
  %413 = vmatpush1.msra.mxu0 0.0
  %414 = vmatprep.subr.mxu0 0.0
  %415 = vmatpush1.msra.mxu0 0.0
  %416 = vmatprep.subr.mxu0 0.0
  %417 = vmatpush1.msra.mxu0 0.0
  %418 = vmatprep.subr.mxu0 0.0
  %419 = vmatpush1.msra.mxu0 0.0
  %420 = vmatprep.subr.mxu0 0.0
  %421 = vmatpush1.msra.mxu0 0.0
  %422 = vmatprep.subr.mxu0 0.0
  %423 = vmatpush1.msra.mxu0 0.0
  %424 = vmatprep.subr.mxu0 0.0
  %425 = vmatpush1.msra.mxu0 0.0
  %426 = vmatprep.subr.mxu0 0.0
  %427 = vmatpush1.msra.mxu0 0.0
  %428 = vmatprep.subr.mxu0 0.0
  %429 = vmatpush1.msra.mxu0 0.0
  %430 = vmatprep.subr.mxu0 0.0
  %431 = vmatpush1.msra.mxu0 0.0
  %432 = vmatprep.subr.mxu0 0.0
  %433 = vmatpush1.msra.mxu0 0.0
  %434 = vmatprep.subr.mxu0 0.0
  %435 = vmatpush1.msra.mxu0 0.0
  %436 = vmatprep.subr.mxu0 0.0
  %437 = vmatpush1.msra.mxu0 0.0
  %438 = vmatprep.subr.mxu0 0.0
  %439 = vmatpush1.msra.mxu0 0.0
  %440 = vmatprep.subr.mxu0 0.0
  %441 = vmatpush1.msra.mxu0 0.0
  %442 = vmatprep.subr.mxu0 0.0
  %443 = vmatpush1.msra.mxu0 0.0
  %444 = vmatprep.subr.mxu0 0.0
  %445 = vmatpush1.msra.mxu0 0.0
  %446 = vmatprep.subr.mxu0 0.0
  %447 = vmatpush1.msra.mxu0 0.0
  %448 = vmatprep.subr.mxu0 0.0
  %449 = vmatpush1.msra.mxu0 0.0
  %450 = vmatprep.subr.mxu0 0.0
  %451 = vmatpush1.msra.mxu0 0.0
  %452 = vmatprep.subr.mxu0 0.0
  %453 = vmatpush1.msra.mxu0 0.0
  %454 = vmatprep.subr.mxu0 0.0
  %455 = vmatpush1.msra.mxu0 0.0
  %456 = vmatprep.mubr.f32.mxu0 0.0
  %457 = vmatmul.mubr.f32.gmra.mrb[0].mxu0 %v381
  %v458 = vpop.f32.mrb[0].mxu0
  %v459 = vadd.f32 %v378, %v458
  %v460 = vpop.f32.mrb[0].mxu0
  %461 = vmatprep.mubr.f32.mxu0 0.0
  %462 = vmatmul.mubr.f32.gmra.mrb[0].mxu0 %v384
  %v463 = vpop.f32.mrb[0].mxu0
  %v464 = vadd.f32 %v378, %v463
  %v465 = vpop.f32.mrb[0].mxu0
  %466 = vmatprep.mubr.f32.mxu0 0.0
  %467 = vmatmul.mubr.f32.gmra.mrb[0].mxu0 %v387
  %v468 = vpop.f32.mrb[0].mxu0
  %v469 = vadd.f32 %v378, %v468
  %v470 = vpop.f32.mrb[0].mxu0
  %471 = vmatprep.mubr.f32.mxu0 0.0
  %472 = vmatmul.mubr.f32.gmra.mrb[0].mxu0 %v390
  %v473 = vpop.f32.mrb[0].mxu0
  %v474 = vadd.f32 %v378, %v473
  %v475 = vpop.f32.mrb[0].mxu0
  %476 = vdwg.mxu0
  %v477 = vld [vmem:[%s4 + $0xc0] sm:$0xff]
  %v478 = vld [vmem:[%s4 + $0xd0] sm:$0xff]
  %v479 = vld [vmem:[%s1] sm:$0xff]
  %v480 = vld [vmem:[%s1 + $0x8] sm:$0xff]
  %v481 = vld [vmem:[%s1 + $0x10] sm:$0xff]
  %v482 = vld [vmem:[%s1 + $0x18] sm:$0xff]
  %vm483 = vcmask 130048
  %v485 = vsel %vm483, %v459, 0
  %v488 = vsel %vm483, %v464, 0
  %v491 = vsel %vm483, %v469, 0
  %v494 = vsel %vm483, %v474, 0
  %496 = vmatprep.subr.mxu0 0.0
  %497 = vmatpush1.msra.mxu0 %v477
  %498 = vmatprep.subr.mxu0 0.0
  %499 = vmatpush1.msra.mxu0 %v478
  %500 = vmatprep.subr.mxu0 0.0
  %501 = vmatpush1.msra.mxu0 0.0
  %502 = vmatprep.subr.mxu0 0.0
  %503 = vmatpush1.msra.mxu0 0.0
  %504 = vmatprep.subr.mxu0 0.0
  %505 = vmatpush1.msra.mxu0 0.0
  %506 = vmatprep.subr.mxu0 0.0
  %507 = vmatpush1.msra.mxu0 0.0
  %508 = vmatprep.subr.mxu0 0.0
  %509 = vmatpush1.msra.mxu0 0.0
  %510 = vmatprep.subr.mxu0 0.0
  %511 = vmatpush1.msra.mxu0 0.0
  %512 = vmatprep.subr.mxu0 0.0
  %513 = vmatpush1.msra.mxu0 0.0
  %514 = vmatprep.subr.mxu0 0.0
  %515 = vmatpush1.msra.mxu0 0.0
  %516 = vmatprep.subr.mxu0 0.0
  %517 = vmatpush1.msra.mxu0 0.0
  %518 = vmatprep.subr.mxu0 0.0
  %519 = vmatpush1.msra.mxu0 0.0
  %520 = vmatprep.subr.mxu0 0.0
  %521 = vmatpush1.msra.mxu0 0.0
  %522 = vmatprep.subr.mxu0 0.0
  %523 = vmatpush1.msra.mxu0 0.0
  %524 = vmatprep.subr.mxu0 0.0
  %525 = vmatpush1.msra.mxu0 0.0
  %526 = vmatprep.subr.mxu0 0.0
  %527 = vmatpush1.msra.mxu0 0.0
  %528 = vmatprep.subr.mxu0 0.0
  %529 = vmatpush1.msra.mxu0 0.0
  %530 = vmatprep.subr.mxu0 0.0
  %531 = vmatpush1.msra.mxu0 0.0
  %532 = vmatprep.subr.mxu0 0.0
  %533 = vmatpush1.msra.mxu0 0.0
  %534 = vmatprep.subr.mxu0 0.0
  %535 = vmatpush1.msra.mxu0 0.0
  %536 = vmatprep.subr.mxu0 0.0
  %537 = vmatpush1.msra.mxu0 0.0
  %538 = vmatprep.subr.mxu0 0.0
  %539 = vmatpush1.msra.mxu0 0.0
  %540 = vmatprep.subr.mxu0 0.0
  %541 = vmatpush1.msra.mxu0 0.0
  %542 = vmatprep.subr.mxu0 0.0
  %543 = vmatpush1.msra.mxu0 0.0
  %544 = vmatprep.subr.mxu0 0.0
  %545 = vmatpush1.msra.mxu0 0.0
  %546 = vmatprep.subr.mxu0 0.0
  %547 = vmatpush1.msra.mxu0 0.0
  %548 = vmatprep.subr.mxu0 0.0
  %549 = vmatpush1.msra.mxu0 0.0
  %550 = vmatprep.subr.mxu0 0.0
  %551 = vmatpush1.msra.mxu0 0.0
  %552 = vmatprep.subr.mxu0 0.0
  %553 = vmatpush1.msra.mxu0 0.0
  %554 = vmatprep.subr.mxu0 0.0
  %555 = vmatpush1.msra.mxu0 0.0
  %556 = vmatprep.subr.mxu0 0.0
  %557 = vmatpush1.msra.mxu0 0.0
  %558 = vmatprep.subr.mxu0 0.0
  %559 = vmatpush1.msra.mxu0 0.0
  %560 = vmatprep.mubr.f32.mxu0 0.0
  %561 = vmatmul.mubr.f32.gmra.mrb[0].mxu0 %v485
  %v562 = vpop.f32.mrb[0].mxu0
  %v563 = vadd.f32 %v479, %v562
  %v564 = vpop.f32.mrb[0].mxu0
  %565 = vmatprep.mubr.f32.mxu0 0.0
  %566 = vmatmul.mubr.f32.gmra.mrb[0].mxu0 %v488
  %v567 = vpop.f32.mrb[0].mxu0
  %v568 = vadd.f32 %v480, %v567
  %v569 = vpop.f32.mrb[0].mxu0
  %570 = vmatprep.mubr.f32.mxu0 0.0
  %571 = vmatmul.mubr.f32.gmra.mrb[0].mxu0 %v491
  %v572 = vpop.f32.mrb[0].mxu0
  %v573 = vadd.f32 %v481, %v572
  %v574 = vpop.f32.mrb[0].mxu0
  %575 = vmatprep.mubr.f32.mxu0 0.0
  %576 = vmatmul.mubr.f32.gmra.mrb[0].mxu0 %v494
  %v577 = vpop.f32.mrb[0].mxu0
  %v578 = vadd.f32 %v482, %v577
  %v579 = vpop.f32.mrb[0].mxu0
  %580 = vdwg.mxu0
  %v581 = vld [vmem:[%s4 + $0xe0] sm:$0xff]
  %v582 = vld [vmem:[%s4 + $0xf0] sm:$0xff]
  %v583 = vld [vmem:[%s4 + $0x100] sm:$0xff]
  %v584 = vld [vmem:[%s4 + $0x110] sm:$0xff]
  %v585 = vld [vmem:[%s4 + $0x120] sm:$0xff]
  %v586 = vld [vmem:[%s4 + $0x130] sm:$0xff]
  %v587 = vld [vmem:[%s4 + $0x140] sm:$0xff]
  %v588 = vld [vmem:[%s4 + $0x150] sm:$0xff]
  %v589 = vld [vmem:[%s4 + $0x410] ss:$0 sm:$0xff]
  %v591 = vsel %vm379, %v563, 0
  %v594 = vsel %vm379, %v568, 0
  %v597 = vsel %vm379, %v573, 0
  %v600 = vsel %vm379, %v578, 0
  %602 = vmatprep.subr.mxu0 0.0
  %603 = vmatpush1.msra.mxu0 %v581
  %604 = vmatprep.subr.mxu0 0.0
  %605 = vmatpush1.msra.mxu0 %v582
  %606 = vmatprep.subr.mxu0 0.0
  %607 = vmatpush1.msra.mxu0 %v583
  %608 = vmatprep.subr.mxu0 0.0
  %609 = vmatpush1.msra.mxu0 %v584
  %610 = vmatprep.subr.mxu0 0.0
  %611 = vmatpush1.msra.mxu0 %v585
  %612 = vmatprep.subr.mxu0 0.0
  %613 = vmatpush1.msra.mxu0 %v586
  %614 = vmatprep.subr.mxu0 0.0
  %615 = vmatpush1.msra.mxu0 %v587
  %616 = vmatprep.subr.mxu0 0.0
  %617 = vmatpush1.msra.mxu0 %v588
  %618 = vmatprep.subr.mxu0 0.0
  %619 = vmatpush1.msra.mxu0 0.0
  %620 = vmatprep.subr.mxu0 0.0
  %621 = vmatpush1.msra.mxu0 0.0
  %622 = vmatprep.subr.mxu0 0.0
  %623 = vmatpush1.msra.mxu0 0.0
  %624 = vmatprep.subr.mxu0 0.0
  %625 = vmatpush1.msra.mxu0 0.0
  %626 = vmatprep.subr.mxu0 0.0
  %627 = vmatpush1.msra.mxu0 0.0
  %628 = vmatprep.subr.mxu0 0.0
  %629 = vmatpush1.msra.mxu0 0.0
  %630 = vmatprep.subr.mxu0 0.0
  %631 = vmatpush1.msra.mxu0 0.0
  %632 = vmatprep.subr.mxu0 0.0
  %633 = vmatpush1.msra.mxu0 0.0
  %634 = vmatprep.subr.mxu0 0.0
  %635 = vmatpush1.msra.mxu0 0.0
  %636 = vmatprep.subr.mxu0 0.0
  %637 = vmatpush1.msra.mxu0 0.0
  %638 = vmatprep.subr.mxu0 0.0
  %639 = vmatpush1.msra.mxu0 0.0
  %640 = vmatprep.subr.mxu0 0.0
  %641 = vmatpush1.msra.mxu0 0.0
  %642 = vmatprep.subr.mxu0 0.0
  %643 = vmatpush1.msra.mxu0 0.0
  %644 = vmatprep.subr.mxu0 0.0
  %645 = vmatpush1.msra.mxu0 0.0
  %646 = vmatprep.subr.mxu0 0.0
  %647 = vmatpush1.msra.mxu0 0.0
  %648 = vmatprep.subr.mxu0 0.0
  %649 = vmatpush1.msra.mxu0 0.0
  %650 = vmatprep.subr.mxu0 0.0
  %651 = vmatpush1.msra.mxu0 0.0
  %652 = vmatprep.subr.mxu0 0.0
  %653 = vmatpush1.msra.mxu0 0.0
  %654 = vmatprep.subr.mxu0 0.0
  %655 = vmatpush1.msra.mxu0 0.0
  %656 = vmatprep.subr.mxu0 0.0
  %657 = vmatpush1.msra.mxu0 0.0
  %658 = vmatprep.subr.mxu0 0.0
  %659 = vmatpush1.msra.mxu0 0.0
  %660 = vmatprep.subr.mxu0 0.0
  %661 = vmatpush1.msra.mxu0 0.0
  %662 = vmatprep.subr.mxu0 0.0
  %663 = vmatpush1.msra.mxu0 0.0
  %664 = vmatprep.subr.mxu0 0.0
  %665 = vmatpush1.msra.mxu0 0.0
  %666 = vmatprep.mubr.f32.mxu0 0.0
  %667 = vmatmul.mubr.f32.gmra.mrb[0].mxu0 %v591
  %v668 = vpop.f32.mrb[0].mxu0
  %v669 = vadd.f32 %v589, %v668
  %v670 = vpop.f32.mrb[0].mxu0
  %671 = vmatprep.mubr.f32.mxu0 0.0
  %672 = vmatmul.mubr.f32.gmra.mrb[0].mxu0 %v594
  %v673 = vpop.f32.mrb[0].mxu0
  %v674 = vadd.f32 %v589, %v673
  %v675 = vpop.f32.mrb[0].mxu0
  %676 = vmatprep.mubr.f32.mxu0 0.0
  %677 = vmatmul.mubr.f32.gmra.mrb[0].mxu0 %v597
  %v678 = vpop.f32.mrb[0].mxu0
  %v679 = vadd.f32 %v589, %v678
  %v680 = vpop.f32.mrb[0].mxu0
  %681 = vmatprep.mubr.f32.mxu0 0.0
  %682 = vmatmul.mubr.f32.gmra.mrb[0].mxu0 %v600
  %v683 = vpop.f32.mrb[0].mxu0
  %v684 = vadd.f32 %v589, %v683
  %v685 = vpop.f32.mrb[0].mxu0
  %686 = vdwg.mxu0
  %v687 = vmax.f32 %v669, 0.0
  %v688 = vmax.f32 %v674, 0.0
  %v689 = vmax.f32 %v679, 0.0
  %v690 = vmax.f32 %v684, 0.0
  %v691 = vmin.f32 %v687, 6.0
  %v692 = vmin.f32 %v688, 6.0
  %v693 = vmin.f32 %v689, 6.0
  %v694 = vmin.f32 %v690, 6.0
  %v696 = vrot.slane %v694, 7
  %v701 = vrot.slane %v691, 7
  %v702 = vrot.slane %v692, 7
  %v703 = vsel %vm257, %v701, %v702
  %v704 = vrot.slane %v693, 7
  %v705 = vsel %vm257, %v702, %v704
  %v706 = vsel %vm257, %v704, %v696
  %v711 = vsel %vm257, %v696, %v701
  %716 = vrot.lane.b32.xlu0 %v35, 32
  %v717 = vpop.permute.xlu0 %716
  %718 = vrot.lane.b32.xlu0 %v36, 32
  %v719 = vpop.permute.xlu0 %718
  %720 = vrot.lane.b32.xlu0 %v37, 32
  %v721 = vpop.permute.xlu0 %720
  %722 = vrot.lane.b32.xlu0 %v38, 32
  %v723 = vpop.permute.xlu0 %722
  %v728 = vmul.f32 %v711, %v717
  %v729 = vmul.f32 %v703, %v719
  %v730 = vmul.f32 %v705, %v721
  %v731 = vmul.f32 %v706, %v723
  %v732 = vrot.slane %v691, 1
  %v733 = vrot.slane %v692, 1
  %v734 = vsel %vm291, %v732, %v733
  %v735 = vrot.slane %v693, 1
  %v736 = vsel %vm291, %v733, %v735
  %v737 = vrot.slane %v694, 1
  %v738 = vsel %vm291, %v735, %v737
  %v744 = vsel %vm291, %v737, %v732
  %v745 = vmul.f32 %v734, %v40
  %v746 = vmul.f32 %v736, %v41
  %v747 = vmul.f32 %v738, %v42
  %v748 = vmul.f32 %v744, %v43
  %749 = vrot.lane.b32.xlu0 %v35, 96
  %v750 = vpop.permute.xlu0 %749
  %751 = vrot.lane.b32.xlu0 %v36, 96
  %v752 = vpop.permute.xlu0 %751
  %753 = vrot.lane.b32.xlu0 %v37, 96
  %v754 = vpop.permute.xlu0 %753
  %755 = vrot.lane.b32.xlu0 %v38, 96
  %v756 = vpop.permute.xlu0 %755
  %v761 = vmul.f32 %v711, %v750
  %v762 = vmul.f32 %v703, %v752
  %v763 = vmul.f32 %v705, %v754
  %v764 = vmul.f32 %v706, %v756
  %769 = vrot.lane.b32.xlu0 %v40, 64
  %v770 = vpop.permute.xlu0 %769
  %771 = vrot.lane.b32.xlu0 %v41, 64
  %v772 = vpop.permute.xlu0 %771
  %773 = vrot.lane.b32.xlu0 %v42, 64
  %v774 = vpop.permute.xlu0 %773
  %775 = vrot.lane.b32.xlu0 %v43, 64
  %v776 = vpop.permute.xlu0 %775
  %v781 = vmul.f32 %v734, %v770
  %v782 = vmul.f32 %v736, %v772
  %v783 = vmul.f32 %v738, %v774
  %v784 = vmul.f32 %v744, %v776
  %v785 = vrot.slane %v694, 4
  %v787 = vrot.slane %v691, 4
  %v788 = vrot.slane %v692, 4
  %v789 = vsel %vm203, %v787, %v788
  %v790 = vrot.slane %v693, 4
  %v791 = vsel %vm203, %v788, %v790
  %v792 = vsel %vm203, %v790, %v785
  %v797 = vsel %vm203, %v785, %v787
  %802 = vrot.lane.b32.xlu0 %v25, 64
  %v803 = vpop.permute.xlu0 %802
  %804 = vrot.lane.b32.xlu0 %v26, 64
  %v805 = vpop.permute.xlu0 %804
  %806 = vrot.lane.b32.xlu0 %v27, 64
  %v807 = vpop.permute.xlu0 %806
  %808 = vrot.lane.b32.xlu0 %v28, 64
  %v809 = vpop.permute.xlu0 %808
  %v814 = vmul.f32 %v797, %v803
  %v815 = vmul.f32 %v789, %v805
  %v816 = vmul.f32 %v791, %v807
  %v817 = vmul.f32 %v792, %v809
  %818 = vrot.lane.b32.xlu0 %v25, 96
  %v819 = vpop.permute.xlu0 %818
  %820 = vrot.lane.b32.xlu0 %v26, 96
  %v821 = vpop.permute.xlu0 %820
  %822 = vrot.lane.b32.xlu0 %v27, 96
  %v823 = vpop.permute.xlu0 %822
  %824 = vrot.lane.b32.xlu0 %v28, 96
  %v825 = vpop.permute.xlu0 %824
  %v830 = vmul.f32 %v797, %v819
  %v831 = vmul.f32 %v789, %v821
  %v832 = vmul.f32 %v791, %v823
  %v833 = vmul.f32 %v792, %v825
  %v834 = vrot.slane %v694, 3
  %v836 = vrot.slane %v691, 3
  %v837 = vrot.slane %v692, 3
  %v838 = vsel %vm180, %v836, %v837
  %v839 = vrot.slane %v693, 3
  %v840 = vsel %vm180, %v837, %v839
  %v841 = vsel %vm180, %v839, %v834
  %v846 = vsel %vm180, %v834, %v836
  %851 = vrot.lane.b32.xlu0 %v20, 96
  %v852 = vpop.permute.xlu0 %851
  %853 = vrot.lane.b32.xlu0 %v21, 96
  %v854 = vpop.permute.xlu0 %853
  %855 = vrot.lane.b32.xlu0 %v22, 96
  %v856 = vpop.permute.xlu0 %855
  %857 = vrot.lane.b32.xlu0 %v23, 96
  %v858 = vpop.permute.xlu0 %857
  %v863 = vmul.f32 %v846, %v852
  %v864 = vmul.f32 %v838, %v854
  %v865 = vmul.f32 %v840, %v856
  %v866 = vmul.f32 %v841, %v858
  %v867 = vrot.slane %v694, 5
  %v869 = vrot.slane %v691, 5
  %v870 = vrot.slane %v692, 5
  %v871 = vsel %vm230, %v869, %v870
  %v872 = vrot.slane %v693, 5
  %v873 = vsel %vm230, %v870, %v872
  %v874 = vsel %vm230, %v872, %v867
  %v879 = vsel %vm230, %v867, %v869
  %884 = vrot.lane.b32.xlu0 %v30, 64
  %v885 = vpop.permute.xlu0 %884
  %886 = vrot.lane.b32.xlu0 %v31, 64
  %v887 = vpop.permute.xlu0 %886
  %888 = vrot.lane.b32.xlu0 %v32, 64
  %v889 = vpop.permute.xlu0 %888
  %890 = vrot.lane.b32.xlu0 %v33, 64
  %v891 = vpop.permute.xlu0 %890
  %v896 = vmul.f32 %v879, %v885
  %v897 = vmul.f32 %v871, %v887
  %v898 = vmul.f32 %v873, %v889
  %v899 = vmul.f32 %v874, %v891
  %v900 = vmul.f32 %v789, %v50
  %v901 = vmul.f32 %v791, %v51
  %v902 = vmul.f32 %v792, %v52
  %v903 = vmul.f32 %v797, %v53
  %908 = vrot.lane.b32.xlu0 %v50, 32
  %v909 = vpop.permute.xlu0 %908
  %910 = vrot.lane.b32.xlu0 %v51, 32
  %v911 = vpop.permute.xlu0 %910
  %912 = vrot.lane.b32.xlu0 %v52, 32
  %v913 = vpop.permute.xlu0 %912
  %914 = vrot.lane.b32.xlu0 %v53, 32
  %v915 = vpop.permute.xlu0 %914
  %v920 = vmul.f32 %v789, %v909
  %v921 = vmul.f32 %v791, %v911
  %v922 = vmul.f32 %v792, %v913
  %v923 = vmul.f32 %v797, %v915
  %928 = vrot.lane.b32.xlu0 %v45, 32
  %v929 = vpop.permute.xlu0 %928
  %930 = vrot.lane.b32.xlu0 %v46, 32
  %v931 = vpop.permute.xlu0 %930
  %932 = vrot.lane.b32.xlu0 %v47, 32
  %v933 = vpop.permute.xlu0 %932
  %934 = vrot.lane.b32.xlu0 %v48, 32
  %v935 = vpop.permute.xlu0 %934
  %v940 = vmul.f32 %v838, %v929
  %v941 = vmul.f32 %v840, %v931
  %v942 = vmul.f32 %v841, %v933
  %v943 = vmul.f32 %v846, %v935
  %v944 = vmul.f32 %v871, %v55
  %v945 = vmul.f32 %v873, %v56
  %v946 = vmul.f32 %v874, %v57
  %v947 = vmul.f32 %v879, %v58
  %v948 = vld [vmem:[%s4 + $0x3c0] ss:$0 sm:$0xff]
  %v949 = vld [vmem:[%s4 + $0x3c1] ss:$0 sm:$0xff]
  %v950 = vld [vmem:[%s4 + $0x3c2] ss:$0 sm:$0xff]
  %v951 = vld [vmem:[%s4 + $0x3c3] ss:$0 sm:$0xff]
  %v952 = vld [vmem:[%s4 + $0x3c4] ss:$0 sm:$0xff]
  %v953 = vld [vmem:[%s4 + $0x3c5] ss:$0 sm:$0xff]
  %v954 = vld [vmem:[%s4 + $0x3c6] ss:$0 sm:$0xff]
  %v955 = vld [vmem:[%s4 + $0x3c7] ss:$0 sm:$0xff]
  %v956 = vld [vmem:[%s4 + $0x3d0] ss:$0 sm:$0xff]
  %958 = vrot.lane.b32.xlu0 %v948, 96
  %v959 = vpop.permute.xlu0 %958
  %v961 = vmul.f32 %v863, %v959
  %v962 = vmul.f32 %v864, %v959
  %v963 = vmul.f32 %v865, %v959
  %v964 = vmul.f32 %v866, %v959
  %966 = vrot.lane.b32.xlu0 %v949, 64
  %v967 = vpop.permute.xlu0 %966
  %v969 = vmul.f32 %v814, %v967
  %v970 = vmul.f32 %v815, %v967
  %v971 = vmul.f32 %v816, %v967
  %v972 = vmul.f32 %v817, %v967
  %977 = vrot.lane.b32.xlu0 %v969, 32
  %v978 = vpop.permute.xlu0 %977
  %979 = vrot.lane.b32.xlu0 %v970, 32
  %v980 = vpop.permute.xlu0 %979
  %981 = vrot.lane.b32.xlu0 %v971, 32
  %v982 = vpop.permute.xlu0 %981
  %983 = vrot.lane.b32.xlu0 %v972, 32
  %v984 = vpop.permute.xlu0 %983
  %v989 = vadd.f32 %v961, %v978
  %v990 = vadd.f32 %v962, %v980
  %v991 = vadd.f32 %v963, %v982
  %v992 = vadd.f32 %v964, %v984
  %994 = vrot.lane.b32.xlu0 %v950, 96
  %v995 = vpop.permute.xlu0 %994
  %v997 = vmul.f32 %v830, %v995
  %v998 = vmul.f32 %v831, %v995
  %v999 = vmul.f32 %v832, %v995
  %v1000 = vmul.f32 %v833, %v995
  %v1001 = vadd.f32 %v989, %v997
  %v1002 = vadd.f32 %v990, %v998
  %v1003 = vadd.f32 %v991, %v999
  %v1004 = vadd.f32 %v992, %v1000
  %1006 = vrot.lane.b32.xlu0 %v951, 32
  %v1007 = vpop.permute.xlu0 %1006
  %v1009 = vmul.f32 %v728, %v1007
  %v1010 = vmul.f32 %v729, %v1007
  %v1011 = vmul.f32 %v730, %v1007
  %v1012 = vmul.f32 %v731, %v1007
  %1017 = vrot.lane.b32.xlu0 %v1009, 64
  %v1018 = vpop.permute.xlu0 %1017
  %1019 = vrot.lane.b32.xlu0 %v1010, 64
  %v1020 = vpop.permute.xlu0 %1019
  %1021 = vrot.lane.b32.xlu0 %v1011, 64
  %v1022 = vpop.permute.xlu0 %1021
  %1023 = vrot.lane.b32.xlu0 %v1012, 64
  %v1024 = vpop.permute.xlu0 %1023
  %v1029 = vadd.f32 %v1001, %v1018
  %v1030 = vadd.f32 %v1002, %v1020
  %v1031 = vadd.f32 %v1003, %v1022
  %v1032 = vadd.f32 %v1004, %v1024
  %v1033 = vmul.f32 %v691, %v952
  %v1034 = vmul.f32 %v692, %v952
  %v1035 = vmul.f32 %v693, %v952
  %v1036 = vmul.f32 %v694, %v952
  %1041 = vrot.lane.b32.xlu0 %v1033, 96
  %v1042 = vpop.permute.xlu0 %1041
  %1043 = vrot.lane.b32.xlu0 %v1034, 96
  %v1044 = vpop.permute.xlu0 %1043
  %1045 = vrot.lane.b32.xlu0 %v1035, 96
  %v1046 = vpop.permute.xlu0 %1045
  %1047 = vrot.lane.b32.xlu0 %v1036, 96
  %v1048 = vpop.permute.xlu0 %1047
  %v1053 = vadd.f32 %v1029, %v1042
  %v1054 = vadd.f32 %v1030, %v1044
  %v1055 = vadd.f32 %v1031, %v1046
  %v1056 = vadd.f32 %v1032, %v1048
  %1058 = vrot.lane.b32.xlu0 %v953, 32
  %v1059 = vpop.permute.xlu0 %1058
  %v1061 = vmul.f32 %v691, %v1059
  %v1062 = vmul.f32 %v692, %v1059
  %v1063 = vmul.f32 %v693, %v1059
  %v1064 = vmul.f32 %v694, %v1059
  %1069 = vrot.lane.b32.xlu0 %v1061, 64
  %v1070 = vpop.permute.xlu0 %1069
  %1071 = vrot.lane.b32.xlu0 %v1062, 64
  %v1072 = vpop.permute.xlu0 %1071
  %1073 = vrot.lane.b32.xlu0 %v1063, 64
  %v1074 = vpop.permute.xlu0 %1073
  %1075 = vrot.lane.b32.xlu0 %v1064, 64
  %v1076 = vpop.permute.xlu0 %1075
  %v1081 = vadd.f32 %v1053, %v1070
  %v1082 = vadd.f32 %v1054, %v1072
  %v1083 = vadd.f32 %v1055, %v1074
  %v1084 = vadd.f32 %v1056, %v1076
  %1086 = vrot.lane.b32.xlu0 %v954, 96
  %v1087 = vpop.permute.xlu0 %1086
  %v1089 = vmul.f32 %v761, %v1087
  %v1090 = vmul.f32 %v762, %v1087
  %v1091 = vmul.f32 %v763, %v1087
  %v1092 = vmul.f32 %v764, %v1087
  %v1093 = vadd.f32 %v1081, %v1089
  %v1094 = vadd.f32 %v1082, %v1090
  %v1095 = vadd.f32 %v1083, %v1091
  %v1096 = vadd.f32 %v1084, %v1092
  %1098 = vrot.lane.b32.xlu0 %v955, 64
  %v1099 = vpop.permute.xlu0 %1098
  %v1101 = vmul.f32 %v691, %v1099
  %v1102 = vmul.f32 %v692, %v1099
  %v1103 = vmul.f32 %v693, %v1099
  %v1104 = vmul.f32 %v694, %v1099
  %1109 = vrot.lane.b32.xlu0 %v1101, 32
  %v1110 = vpop.permute.xlu0 %1109
  %1111 = vrot.lane.b32.xlu0 %v1102, 32
  %v1112 = vpop.permute.xlu0 %1111
  %1113 = vrot.lane.b32.xlu0 %v1103, 32
  %v1114 = vpop.permute.xlu0 %1113
  %1115 = vrot.lane.b32.xlu0 %v1104, 32
  %v1116 = vpop.permute.xlu0 %1115
  %v1121 = vadd.f32 %v1093, %v1110
  %v1122 = vadd.f32 %v1094, %v1112
  %v1123 = vadd.f32 %v1095, %v1114
  %v1124 = vadd.f32 %v1096, %v1116
  %1126 = vrot.lane.b32.xlu0 %v956, 96
  %v1127 = vpop.permute.xlu0 %1126
  %v1129 = vmul.f32 %v691, %v1127
  %v1130 = vmul.f32 %v692, %v1127
  %v1131 = vmul.f32 %v693, %v1127
  %v1132 = vmul.f32 %v694, %v1127
  %v1133 = vadd.f32 %v1121, %v1129
  %v1134 = vadd.f32 %v1122, %v1130
  %v1135 = vadd.f32 %v1123, %v1131
  %v1136 = vadd.f32 %v1124, %v1132
  %1137 = vrot.lane.b32.xlu0 %v948, 64
  %v1138 = vpop.permute.xlu0 %1137
  %v1140 = vmul.f32 %v814, %v1138
  %v1141 = vmul.f32 %v815, %v1138
  %v1142 = vmul.f32 %v816, %v1138
  %v1143 = vmul.f32 %v817, %v1138
  %1144 = vrot.lane.b32.xlu0 %v949, 96
  %v1145 = vpop.permute.xlu0 %1144
  %v1147 = vmul.f32 %v830, %v1145
  %v1148 = vmul.f32 %v831, %v1145
  %v1149 = vmul.f32 %v832, %v1145
  %v1150 = vmul.f32 %v833, %v1145
  %1155 = vrot.lane.b32.xlu0 %v1147, 96
  %v1156 = vpop.permute.xlu0 %1155
  %1157 = vrot.lane.b32.xlu0 %v1148, 96
  %v1158 = vpop.permute.xlu0 %1157
  %1159 = vrot.lane.b32.xlu0 %v1149, 96
  %v1160 = vpop.permute.xlu0 %1159
  %1161 = vrot.lane.b32.xlu0 %v1150, 96
  %v1162 = vpop.permute.xlu0 %1161
  %v1167 = vadd.f32 %v1140, %v1156
  %v1168 = vadd.f32 %v1141, %v1158
  %v1169 = vadd.f32 %v1142, %v1160
  %v1170 = vadd.f32 %v1143, %v1162
  %1171 = vrot.lane.b32.xlu0 %v950, 64
  %v1172 = vpop.permute.xlu0 %1171
  %v1174 = vmul.f32 %v896, %v1172
  %v1175 = vmul.f32 %v897, %v1172
  %v1176 = vmul.f32 %v898, %v1172
  %v1177 = vmul.f32 %v899, %v1172
  %v1178 = vadd.f32 %v1167, %v1174
  %v1179 = vadd.f32 %v1168, %v1175
  %v1180 = vadd.f32 %v1169, %v1176
  %v1181 = vadd.f32 %v1170, %v1177
  %v1182 = vmul.f32 %v691, %v951
  %v1183 = vmul.f32 %v692, %v951
  %v1184 = vmul.f32 %v693, %v951
  %v1185 = vmul.f32 %v694, %v951
  %1190 = vrot.lane.b32.xlu0 %v1182, 64
  %v1191 = vpop.permute.xlu0 %1190
  %1192 = vrot.lane.b32.xlu0 %v1183, 64
  %v1193 = vpop.permute.xlu0 %1192
  %1194 = vrot.lane.b32.xlu0 %v1184, 64
  %v1195 = vpop.permute.xlu0 %1194
  %1196 = vrot.lane.b32.xlu0 %v1185, 64
  %v1197 = vpop.permute.xlu0 %1196
  %v1202 = vadd.f32 %v1178, %v1191
  %v1203 = vadd.f32 %v1179, %v1193
  %v1204 = vadd.f32 %v1180, %v1195
  %v1205 = vadd.f32 %v1181, %v1197
  %1207 = vrot.lane.b32.xlu0 %v952, 32
  %v1208 = vpop.permute.xlu0 %1207
  %v1210 = vmul.f32 %v691, %v1208
  %v1211 = vmul.f32 %v692, %v1208
  %v1212 = vmul.f32 %v693, %v1208
  %v1213 = vmul.f32 %v694, %v1208
  %1218 = vrot.lane.b32.xlu0 %v1210, 32
  %v1219 = vpop.permute.xlu0 %1218
  %1220 = vrot.lane.b32.xlu0 %v1211, 32
  %v1221 = vpop.permute.xlu0 %1220
  %1222 = vrot.lane.b32.xlu0 %v1212, 32
  %v1223 = vpop.permute.xlu0 %1222
  %1224 = vrot.lane.b32.xlu0 %v1213, 32
  %v1225 = vpop.permute.xlu0 %1224
  %v1230 = vadd.f32 %v1202, %v1219
  %v1231 = vadd.f32 %v1203, %v1221
  %v1232 = vadd.f32 %v1204, %v1223
  %v1233 = vadd.f32 %v1205, %v1225
  %v1234 = vmul.f32 %v745, %v953
  %v1235 = vmul.f32 %v746, %v953
  %v1236 = vmul.f32 %v747, %v953
  %v1237 = vmul.f32 %v748, %v953
  %1242 = vrot.lane.b32.xlu0 %v1234, 64
  %v1243 = vpop.permute.xlu0 %1242
  %1244 = vrot.lane.b32.xlu0 %v1235, 64
  %v1245 = vpop.permute.xlu0 %1244
  %1246 = vrot.lane.b32.xlu0 %v1236, 64
  %v1247 = vpop.permute.xlu0 %1246
  %1248 = vrot.lane.b32.xlu0 %v1237, 64
  %v1249 = vpop.permute.xlu0 %1248
  %v1254 = vadd.f32 %v1230, %v1243
  %v1255 = vadd.f32 %v1231, %v1245
  %v1256 = vadd.f32 %v1232, %v1247
  %v1257 = vadd.f32 %v1233, %v1249
  %1258 = vrot.lane.b32.xlu0 %v954, 64
  %v1259 = vpop.permute.xlu0 %1258
  %v1261 = vmul.f32 %v691, %v1259
  %v1262 = vmul.f32 %v692, %v1259
  %v1263 = vmul.f32 %v693, %v1259
  %v1264 = vmul.f32 %v694, %v1259
  %v1265 = vadd.f32 %v1254, %v1261
  %v1266 = vadd.f32 %v1255, %v1262
  %v1267 = vadd.f32 %v1256, %v1263
  %v1268 = vadd.f32 %v1257, %v1264
  %1269 = vrot.lane.b32.xlu0 %v955, 96
  %v1270 = vpop.permute.xlu0 %1269
  %v1272 = vmul.f32 %v691, %v1270
  %v1273 = vmul.f32 %v692, %v1270
  %v1274 = vmul.f32 %v693, %v1270
  %v1275 = vmul.f32 %v694, %v1270
  %1280 = vrot.lane.b32.xlu0 %v1272, 96
  %v1281 = vpop.permute.xlu0 %1280
  %1282 = vrot.lane.b32.xlu0 %v1273, 96
  %v1283 = vpop.permute.xlu0 %1282
  %1284 = vrot.lane.b32.xlu0 %v1274, 96
  %v1285 = vpop.permute.xlu0 %1284
  %1286 = vrot.lane.b32.xlu0 %v1275, 96
  %v1287 = vpop.permute.xlu0 %1286
  %v1292 = vadd.f32 %v1265, %v1281
  %v1293 = vadd.f32 %v1266, %v1283
  %v1294 = vadd.f32 %v1267, %v1285
  %v1295 = vadd.f32 %v1268, %v1287
  %1296 = vrot.lane.b32.xlu0 %v956, 64
  %v1297 = vpop.permute.xlu0 %1296
  %v1299 = vmul.f32 %v781, %v1297
  %v1300 = vmul.f32 %v782, %v1297
  %v1301 = vmul.f32 %v783, %v1297
  %v1302 = vmul.f32 %v784, %v1297
  %v1303 = vadd.f32 %v1292, %v1299
  %v1304 = vadd.f32 %v1293, %v1300
  %v1305 = vadd.f32 %v1294, %v1301
  %v1306 = vadd.f32 %v1295, %v1302
  %1307 = vrot.lane.b32.xlu0 %v948, 32
  %v1308 = vpop.permute.xlu0 %1307
  %v1310 = vmul.f32 %v728, %v1308
  %v1311 = vmul.f32 %v729, %v1308
  %v1312 = vmul.f32 %v730, %v1308
  %v1313 = vmul.f32 %v731, %v1308
  %v1314 = vmul.f32 %v691, %v949
  %v1315 = vmul.f32 %v692, %v949
  %v1316 = vmul.f32 %v693, %v949
  %v1317 = vmul.f32 %v694, %v949
  %1322 = vrot.lane.b32.xlu0 %v1314, 32
  %v1323 = vpop.permute.xlu0 %1322
  %1324 = vrot.lane.b32.xlu0 %v1315, 32
  %v1325 = vpop.permute.xlu0 %1324
  %1326 = vrot.lane.b32.xlu0 %v1316, 32
  %v1327 = vpop.permute.xlu0 %1326
  %1328 = vrot.lane.b32.xlu0 %v1317, 32
  %v1329 = vpop.permute.xlu0 %1328
  %v1334 = vadd.f32 %v1310, %v1323
  %v1335 = vadd.f32 %v1311, %v1325
  %v1336 = vadd.f32 %v1312, %v1327
  %v1337 = vadd.f32 %v1313, %v1329
  %1338 = vrot.lane.b32.xlu0 %v950, 32
  %v1339 = vpop.permute.xlu0 %1338
  %v1341 = vmul.f32 %v691, %v1339
  %v1342 = vmul.f32 %v692, %v1339
  %v1343 = vmul.f32 %v693, %v1339
  %v1344 = vmul.f32 %v694, %v1339
  %v1345 = vadd.f32 %v1334, %v1341
  %v1346 = vadd.f32 %v1335, %v1342
  %v1347 = vadd.f32 %v1336, %v1343
  %v1348 = vadd.f32 %v1337, %v1344
  %1349 = vrot.lane.b32.xlu0 %v951, 96
  %v1350 = vpop.permute.xlu0 %1349
  %v1352 = vmul.f32 %v761, %v1350
  %v1353 = vmul.f32 %v762, %v1350
  %v1354 = vmul.f32 %v763, %v1350
  %v1355 = vmul.f32 %v764, %v1350
  %1360 = vrot.lane.b32.xlu0 %v1352, 64
  %v1361 = vpop.permute.xlu0 %1360
  %1362 = vrot.lane.b32.xlu0 %v1353, 64
  %v1363 = vpop.permute.xlu0 %1362
  %1364 = vrot.lane.b32.xlu0 %v1354, 64
  %v1365 = vpop.permute.xlu0 %1364
  %1366 = vrot.lane.b32.xlu0 %v1355, 64
  %v1367 = vpop.permute.xlu0 %1366
  %v1372 = vadd.f32 %v1345, %v1361
  %v1373 = vadd.f32 %v1346, %v1363
  %v1374 = vadd.f32 %v1347, %v1365
  %v1375 = vadd.f32 %v1348, %v1367
  %1376 = vrot.lane.b32.xlu0 %v952, 64
  %v1377 = vpop.permute.xlu0 %1376
  %v1379 = vmul.f32 %v691, %v1377
  %v1380 = vmul.f32 %v692, %v1377
  %v1381 = vmul.f32 %v693, %v1377
  %v1382 = vmul.f32 %v694, %v1377
  %1387 = vrot.lane.b32.xlu0 %v1379, 96
  %v1388 = vpop.permute.xlu0 %1387
  %1389 = vrot.lane.b32.xlu0 %v1380, 96
  %v1390 = vpop.permute.xlu0 %1389
  %1391 = vrot.lane.b32.xlu0 %v1381, 96
  %v1392 = vpop.permute.xlu0 %1391
  %1393 = vrot.lane.b32.xlu0 %v1382, 96
  %v1394 = vpop.permute.xlu0 %1393
  %v1399 = vadd.f32 %v1372, %v1388
  %v1400 = vadd.f32 %v1373, %v1390
  %v1401 = vadd.f32 %v1374, %v1392
  %v1402 = vadd.f32 %v1375, %v1394
  %1403 = vrot.lane.b32.xlu0 %v953, 96
  %v1404 = vpop.permute.xlu0 %1403
  %v1406 = vmul.f32 %v691, %v1404
  %v1407 = vmul.f32 %v692, %v1404
  %v1408 = vmul.f32 %v693, %v1404
  %v1409 = vmul.f32 %v694, %v1404
  %1414 = vrot.lane.b32.xlu0 %v1406, 64
  %v1415 = vpop.permute.xlu0 %1414
  %1416 = vrot.lane.b32.xlu0 %v1407, 64
  %v1417 = vpop.permute.xlu0 %1416
  %1418 = vrot.lane.b32.xlu0 %v1408, 64
  %v1419 = vpop.permute.xlu0 %1418
  %1420 = vrot.lane.b32.xlu0 %v1409, 64
  %v1421 = vpop.permute.xlu0 %1420
  %v1426 = vadd.f32 %v1399, %v1415
  %v1427 = vadd.f32 %v1400, %v1417
  %v1428 = vadd.f32 %v1401, %v1419
  %v1429 = vadd.f32 %v1402, %v1421
  %1430 = vrot.lane.b32.xlu0 %v954, 32
  %v1431 = vpop.permute.xlu0 %1430
  %v1433 = vmul.f32 %v940, %v1431
  %v1434 = vmul.f32 %v941, %v1431
  %v1435 = vmul.f32 %v942, %v1431
  %v1436 = vmul.f32 %v943, %v1431
  %v1437 = vadd.f32 %v1426, %v1433
  %v1438 = vadd.f32 %v1427, %v1434
  %v1439 = vadd.f32 %v1428, %v1435
  %v1440 = vadd.f32 %v1429, %v1436
  %v1441 = vmul.f32 %v900, %v955
  %v1442 = vmul.f32 %v901, %v955
  %v1443 = vmul.f32 %v902, %v955
  %v1444 = vmul.f32 %v903, %v955
  %1449 = vrot.lane.b32.xlu0 %v1441, 32
  %v1450 = vpop.permute.xlu0 %1449
  %1451 = vrot.lane.b32.xlu0 %v1442, 32
  %v1452 = vpop.permute.xlu0 %1451
  %1453 = vrot.lane.b32.xlu0 %v1443, 32
  %v1454 = vpop.permute.xlu0 %1453
  %1455 = vrot.lane.b32.xlu0 %v1444, 32
  %v1456 = vpop.permute.xlu0 %1455
  %v1461 = vadd.f32 %v1437, %v1450
  %v1462 = vadd.f32 %v1438, %v1452
  %v1463 = vadd.f32 %v1439, %v1454
  %v1464 = vadd.f32 %v1440, %v1456
  %1465 = vrot.lane.b32.xlu0 %v956, 32
  %v1466 = vpop.permute.xlu0 %1465
  %v1468 = vmul.f32 %v920, %v1466
  %v1469 = vmul.f32 %v921, %v1466
  %v1470 = vmul.f32 %v922, %v1466
  %v1471 = vmul.f32 %v923, %v1466
  %v1472 = vadd.f32 %v1461, %v1468
  %v1473 = vadd.f32 %v1462, %v1469
  %v1474 = vadd.f32 %v1463, %v1470
  %v1475 = vadd.f32 %v1464, %v1471
  %v1476 = vmul.f32 %v691, %v948
  %v1477 = vmul.f32 %v692, %v948
  %v1478 = vmul.f32 %v693, %v948
  %v1479 = vmul.f32 %v694, %v948
  %1480 = vrot.lane.b32.xlu0 %v949, 32
  %v1481 = vpop.permute.xlu0 %1480
  %v1483 = vmul.f32 %v691, %v1481
  %v1484 = vmul.f32 %v692, %v1481
  %v1485 = vmul.f32 %v693, %v1481
  %v1486 = vmul.f32 %v694, %v1481
  %1491 = vrot.lane.b32.xlu0 %v1483, 96
  %v1492 = vpop.permute.xlu0 %1491
  %1493 = vrot.lane.b32.xlu0 %v1484, 96
  %v1494 = vpop.permute.xlu0 %1493
  %1495 = vrot.lane.b32.xlu0 %v1485, 96
  %v1496 = vpop.permute.xlu0 %1495
  %1497 = vrot.lane.b32.xlu0 %v1486, 96
  %v1498 = vpop.permute.xlu0 %1497
  %v1503 = vadd.f32 %v1476, %v1492
  %v1504 = vadd.f32 %v1477, %v1494
  %v1505 = vadd.f32 %v1478, %v1496
  %v1506 = vadd.f32 %v1479, %v1498
  %v1507 = vmul.f32 %v745, %v950
  %v1508 = vmul.f32 %v746, %v950
  %v1509 = vmul.f32 %v747, %v950
  %v1510 = vmul.f32 %v748, %v950
  %v1511 = vadd.f32 %v1503, %v1507
  %v1512 = vadd.f32 %v1504, %v1508
  %v1513 = vadd.f32 %v1505, %v1509
  %v1514 = vadd.f32 %v1506, %v1510
  %1515 = vrot.lane.b32.xlu0 %v951, 64
  %v1516 = vpop.permute.xlu0 %1515
  %v1518 = vmul.f32 %v691, %v1516
  %v1519 = vmul.f32 %v692, %v1516
  %v1520 = vmul.f32 %v693, %v1516
  %v1521 = vmul.f32 %v694, %v1516
  %1526 = vrot.lane.b32.xlu0 %v1518, 64
  %v1527 = vpop.permute.xlu0 %1526
  %1528 = vrot.lane.b32.xlu0 %v1519, 64
  %v1529 = vpop.permute.xlu0 %1528
  %1530 = vrot.lane.b32.xlu0 %v1520, 64
  %v1531 = vpop.permute.xlu0 %1530
  %1532 = vrot.lane.b32.xlu0 %v1521, 64
  %v1533 = vpop.permute.xlu0 %1532
  %v1538 = vadd.f32 %v1511, %v1527
  %v1539 = vadd.f32 %v1512, %v1529
  %v1540 = vadd.f32 %v1513, %v1531
  %v1541 = vadd.f32 %v1514, %v1533
  %1542 = vrot.lane.b32.xlu0 %v952, 96
  %v1543 = vpop.permute.xlu0 %1542
  %v1545 = vmul.f32 %v691, %v1543
  %v1546 = vmul.f32 %v692, %v1543
  %v1547 = vmul.f32 %v693, %v1543
  %v1548 = vmul.f32 %v694, %v1543
  %1553 = vrot.lane.b32.xlu0 %v1545, 32
  %v1554 = vpop.permute.xlu0 %1553
  %1555 = vrot.lane.b32.xlu0 %v1546, 32
  %v1556 = vpop.permute.xlu0 %1555
  %1557 = vrot.lane.b32.xlu0 %v1547, 32
  %v1558 = vpop.permute.xlu0 %1557
  %1559 = vrot.lane.b32.xlu0 %v1548, 32
  %v1560 = vpop.permute.xlu0 %1559
  %v1565 = vadd.f32 %v1538, %v1554
  %v1566 = vadd.f32 %v1539, %v1556
  %v1567 = vadd.f32 %v1540, %v1558
  %v1568 = vadd.f32 %v1541, %v1560
  %1569 = vrot.lane.b32.xlu0 %v953, 64
  %v1570 = vpop.permute.xlu0 %1569
  %v1572 = vmul.f32 %v781, %v1570
  %v1573 = vmul.f32 %v782, %v1570
  %v1574 = vmul.f32 %v783, %v1570
  %v1575 = vmul.f32 %v784, %v1570
  %1580 = vrot.lane.b32.xlu0 %v1572, 64
  %v1581 = vpop.permute.xlu0 %1580
  %1582 = vrot.lane.b32.xlu0 %v1573, 64
  %v1583 = vpop.permute.xlu0 %1582
  %1584 = vrot.lane.b32.xlu0 %v1574, 64
  %v1585 = vpop.permute.xlu0 %1584
  %1586 = vrot.lane.b32.xlu0 %v1575, 64
  %v1587 = vpop.permute.xlu0 %1586
  %v1592 = vadd.f32 %v1565, %v1581
  %v1593 = vadd.f32 %v1566, %v1583
  %v1594 = vadd.f32 %v1567, %v1585
  %v1595 = vadd.f32 %v1568, %v1587
  %v1596 = vmul.f32 %v900, %v954
  %v1597 = vmul.f32 %v901, %v954
  %v1598 = vmul.f32 %v902, %v954
  %v1599 = vmul.f32 %v903, %v954
  %v1600 = vadd.f32 %v1592, %v1596
  %v1601 = vadd.f32 %v1593, %v1597
  %v1602 = vadd.f32 %v1594, %v1598
  %v1603 = vadd.f32 %v1595, %v1599
  %1604 = vrot.lane.b32.xlu0 %v955, 32
  %v1605 = vpop.permute.xlu0 %1604
  %v1607 = vmul.f32 %v920, %v1605
  %v1608 = vmul.f32 %v921, %v1605
  %v1609 = vmul.f32 %v922, %v1605
  %v1610 = vmul.f32 %v923, %v1605
  %1615 = vrot.lane.b32.xlu0 %v1607, 96
  %v1616 = vpop.permute.xlu0 %1615
  %1617 = vrot.lane.b32.xlu0 %v1608, 96
  %v1618 = vpop.permute.xlu0 %1617
  %1619 = vrot.lane.b32.xlu0 %v1609, 96
  %v1620 = vpop.permute.xlu0 %1619
  %1621 = vrot.lane.b32.xlu0 %v1610, 96
  %v1622 = vpop.permute.xlu0 %1621
  %v1627 = vadd.f32 %v1600, %v1616
  %v1628 = vadd.f32 %v1601, %v1618
  %v1629 = vadd.f32 %v1602, %v1620
  %v1630 = vadd.f32 %v1603, %v1622
  %v1631 = vmul.f32 %v944, %v956
  %v1632 = vmul.f32 %v945, %v956
  %v1633 = vmul.f32 %v946, %v956
  %v1634 = vmul.f32 %v947, %v956
  %v1635 = vadd.f32 %v1627, %v1631
  %v1636 = vadd.f32 %v1628, %v1632
  %v1637 = vadd.f32 %v1629, %v1633
  %v1638 = vadd.f32 %v1630, %v1634
  %1643 = vrot.lane.b32.xlu0 %v1133, 32
  %v1644 = vpop.permute.xlu0 %1643
  %1645 = vrot.lane.b32.xlu0 %v1134, 32
  %v1646 = vpop.permute.xlu0 %1645
  %1647 = vrot.lane.b32.xlu0 %v1135, 32
  %v1648 = vpop.permute.xlu0 %1647
  %1649 = vrot.lane.b32.xlu0 %v1136, 32
  %v1650 = vpop.permute.xlu0 %1649
  %1659 = vrot.lane.b32.xlu0 %v1303, 96
  %v1660 = vpop.permute.xlu0 %1659
  %1661 = vrot.lane.b32.xlu0 %v1304, 96
  %v1662 = vpop.permute.xlu0 %1661
  %1663 = vrot.lane.b32.xlu0 %v1305, 96
  %v1664 = vpop.permute.xlu0 %1663
  %1665 = vrot.lane.b32.xlu0 %v1306, 96
  %v1666 = vpop.permute.xlu0 %1665
  %1675 = vrot.lane.b32.xlu0 %v1472, 32
  %v1676 = vpop.permute.xlu0 %1675
  %1677 = vrot.lane.b32.xlu0 %v1473, 32
  %v1678 = vpop.permute.xlu0 %1677
  %1679 = vrot.lane.b32.xlu0 %v1474, 32
  %v1680 = vpop.permute.xlu0 %1679
  %1681 = vrot.lane.b32.xlu0 %v1475, 32
  %v1682 = vpop.permute.xlu0 %1681
  %1691 = vrot.lane.b32.xlu0 %v1635, 96
  %v1692 = vpop.permute.xlu0 %1691
  %1693 = vrot.lane.b32.xlu0 %v1636, 96
  %v1694 = vpop.permute.xlu0 %1693
  %1695 = vrot.lane.b32.xlu0 %v1637, 96
  %v1696 = vpop.permute.xlu0 %1695
  %1697 = vrot.lane.b32.xlu0 %v1638, 96
  %v1698 = vpop.permute.xlu0 %1697
  %v1703 = vsel %vm68, %v1644, %v1660
  %v1704 = vsel %vm68, %v1646, %v1662
  %v1705 = vsel %vm68, %v1648, %v1664
  %v1706 = vsel %vm68, %v1650, %v1666
  %v1707 = vsel %vm379, %v1703, %v1676
  %v1708 = vsel %vm379, %v1704, %v1678
  %v1709 = vsel %vm379, %v1705, %v1680
  %v1710 = vsel %vm379, %v1706, %v1682
  %vm1711 = vcmask 785408
  %v1712 = vsel %vm1711, %v1707, %v1692
  %v1713 = vsel %vm1711, %v1708, %v1694
  %v1714 = vsel %vm1711, %v1709, %v1696
  %v1715 = vsel %vm1711, %v1710, %v1698
  %v1716 = vld [vmem:[%s4 + $0x420] ss:$0 sm:$0xff]
  %v1717 = vadd.f32 %v1712, %v1716
  %v1718 = vadd.f32 %v1713, %v1716
  %v1719 = vadd.f32 %v1714, %v1716
  %v1720 = vadd.f32 %v1715, %v1716
  %v1721 = vmax.f32 %v1717, 0.0
  %v1722 = vmax.f32 %v1718, 0.0
  %v1723 = vmax.f32 %v1719, 0.0
  %v1724 = vmax.f32 %v1720, 0.0
  %v1725 = vmin.f32 %v1721, 6.0
  %v1726 = vmin.f32 %v1722, 6.0
  %v1727 = vmin.f32 %v1723, 6.0
  %v1728 = vmin.f32 %v1724, 6.0
  %v1729 = vld [vmem:[%s4 + $0x160] sm:$0xff]
  %v1730 = vld [vmem:[%s4 + $0x170] sm:$0xff]
  %v1731 = vld [vmem:[%s4 + $0x180] sm:$0xff]
  %v1732 = vld [vmem:[%s4 + $0x190] sm:$0xff]
  %v1733 = vld [vmem:[%s4 + $0x1a0] sm:$0xff]
  %v1734 = vld [vmem:[%s4 + $0x1b0] sm:$0xff]
  %v1735 = vld [vmem:[%s4 + $0x1c0] sm:$0xff]
  %v1736 = vld [vmem:[%s4 + $0x1d0] sm:$0xff]
  %v1737 = vld [vmem:[%s4 + $0x1e0] sm:$0xff]
  %v1738 = vld [vmem:[%s4 + $0x1f0] sm:$0xff]
  %v1739 = vld [vmem:[%s4 + $0x200] sm:$0xff]
  %v1740 = vld [vmem:[%s4 + $0x210] sm:$0xff]
  %v1741 = vld [vmem:[%s4 + $0x220] sm:$0xff]
  %v1742 = vld [vmem:[%s4 + $0x230] sm:$0xff]
  %v1743 = vld [vmem:[%s4 + $0x240] sm:$0xff]
  %v1744 = vld [vmem:[%s4 + $0x250] sm:$0xff]
  %v1745 = vld [vmem:[%s4 + $0x430] ss:$0 sm:$0xff]
  %1746 = vmatprep.subr.mxu0 0.0
  %1747 = vmatpush1.msra.mxu0 %v1729
  %1748 = vmatprep.subr.mxu0 0.0
  %1749 = vmatpush1.msra.mxu0 %v1730
  %1750 = vmatprep.subr.mxu0 0.0
  %1751 = vmatpush1.msra.mxu0 %v1731
  %1752 = vmatprep.subr.mxu0 0.0
  %1753 = vmatpush1.msra.mxu0 %v1732
  %1754 = vmatprep.subr.mxu0 0.0
  %1755 = vmatpush1.msra.mxu0 %v1733
  %1756 = vmatprep.subr.mxu0 0.0
  %1757 = vmatpush1.msra.mxu0 %v1734
  %1758 = vmatprep.subr.mxu0 0.0
  %1759 = vmatpush1.msra.mxu0 %v1735
  %1760 = vmatprep.subr.mxu0 0.0
  %1761 = vmatpush1.msra.mxu0 %v1736
  %1762 = vmatprep.subr.mxu0 0.0
  %1763 = vmatpush1.msra.mxu0 %v1737
  %1764 = vmatprep.subr.mxu0 0.0
  %1765 = vmatpush1.msra.mxu0 %v1738
  %1766 = vmatprep.subr.mxu0 0.0
  %1767 = vmatpush1.msra.mxu0 %v1739
  %1768 = vmatprep.subr.mxu0 0.0
  %1769 = vmatpush1.msra.mxu0 %v1740
  %1770 = vmatprep.subr.mxu0 0.0
  %1771 = vmatpush1.msra.mxu0 %v1741
  %1772 = vmatprep.subr.mxu0 0.0
  %1773 = vmatpush1.msra.mxu0 %v1742
  %1774 = vmatprep.subr.mxu0 0.0
  %1775 = vmatpush1.msra.mxu0 %v1743
  %1776 = vmatprep.subr.mxu0 0.0
  %1777 = vmatpush1.msra.mxu0 %v1744
  %1778 = vmatprep.subr.mxu0 0.0
  %1779 = vmatpush1.msra.mxu0 0.0
  %1780 = vmatprep.subr.mxu0 0.0
  %1781 = vmatpush1.msra.mxu0 0.0
  %1782 = vmatprep.subr.mxu0 0.0
  %1783 = vmatpush1.msra.mxu0 0.0
  %1784 = vmatprep.subr.mxu0 0.0
  %1785 = vmatpush1.msra.mxu0 0.0
  %1786 = vmatprep.subr.mxu0 0.0
  %1787 = vmatpush1.msra.mxu0 0.0
  %1788 = vmatprep.subr.mxu0 0.0
  %1789 = vmatpush1.msra.mxu0 0.0
  %1790 = vmatprep.subr.mxu0 0.0
  %1791 = vmatpush1.msra.mxu0 0.0
  %1792 = vmatprep.subr.mxu0 0.0
  %1793 = vmatpush1.msra.mxu0 0.0
  %1794 = vmatprep.subr.mxu0 0.0
  %1795 = vmatpush1.msra.mxu0 0.0
  %1796 = vmatprep.subr.mxu0 0.0
  %1797 = vmatpush1.msra.mxu0 0.0
  %1798 = vmatprep.subr.mxu0 0.0
  %1799 = vmatpush1.msra.mxu0 0.0
  %1800 = vmatprep.subr.mxu0 0.0
  %1801 = vmatpush1.msra.mxu0 0.0
  %1802 = vmatprep.subr.mxu0 0.0
  %1803 = vmatpush1.msra.mxu0 0.0
  %1804 = vmatprep.subr.mxu0 0.0
  %1805 = vmatpush1.msra.mxu0 0.0
  %1806 = vmatprep.subr.mxu0 0.0
  %1807 = vmatpush1.msra.mxu0 0.0
  %1808 = vmatprep.subr.mxu0 0.0
  %1809 = vmatpush1.msra.mxu0 0.0
  %1810 = vmatprep.mubr.f32.mxu0 0.0
  %1811 = vmatmul.mubr.f32.gmra.mrb[0].mxu0 %v1725
  %v1812 = vpop.f32.mrb[0].mxu0
  %v1813 = vadd.f32 %v1745, %v1812
  %v1814 = vpop.f32.mrb[0].mxu0
  %1815 = vmatprep.mubr.f32.mxu0 0.0
  %1816 = vmatmul.mubr.f32.gmra.mrb[0].mxu0 %v1726
  %v1817 = vpop.f32.mrb[0].mxu0
  %v1818 = vadd.f32 %v1745, %v1817
  %v1819 = vpop.f32.mrb[0].mxu0
  %1820 = vmatprep.mubr.f32.mxu0 0.0
  %1821 = vmatmul.mubr.f32.gmra.mrb[0].mxu0 %v1727
  %v1822 = vpop.f32.mrb[0].mxu0
  %v1823 = vadd.f32 %v1745, %v1822
  %v1824 = vpop.f32.mrb[0].mxu0
  %1825 = vmatprep.mubr.f32.mxu0 0.0
  %1826 = vmatmul.mubr.f32.gmra.mrb[0].mxu0 %v1728
  %v1827 = vpop.f32.mrb[0].mxu0
  %v1828 = vadd.f32 %v1745, %v1827
  %v1829 = vpop.f32.mrb[0].mxu0
  %1830 = vdwg.mxu0
  %v1831 = vld [vmem:[%s4 + $0x260] sm:$0xff]
  %v1832 = vld [vmem:[%s4 + $0x270] sm:$0xff]
  %v1833 = vld [vmem:[%s4 + $0x280] sm:$0xff]
  %v1834 = vld [vmem:[%s4 + $0x290] sm:$0xff]
  %v1835 = vld [vmem:[%s2] sm:$0xff]
  %v1836 = vld [vmem:[%s2 + $0x8] sm:$0xff]
  %v1837 = vld [vmem:[%s2 + $0x10] sm:$0xff]
  %v1838 = vld [vmem:[%s2 + $0x18] sm:$0xff]
  %v1840 = vsel %vm68, %v1813, 0
  %v1843 = vsel %vm68, %v1818, 0
  %v1846 = vsel %vm68, %v1823, 0
  %v1849 = vsel %vm68, %v1828, 0
  %1851 = vmatprep.subr.mxu0 0.0
  %1852 = vmatpush1.msra.mxu0 %v1831
  %1853 = vmatprep.subr.mxu0 0.0
  %1854 = vmatpush1.msra.mxu0 %v1832
  %1855 = vmatprep.subr.mxu0 0.0
  %1856 = vmatpush1.msra.mxu0 %v1833
  %1857 = vmatprep.subr.mxu0 0.0
  %1858 = vmatpush1.msra.mxu0 %v1834
  %1859 = vmatprep.subr.mxu0 0.0
  %1860 = vmatpush1.msra.mxu0 0.0
  %1861 = vmatprep.subr.mxu0 0.0
  %1862 = vmatpush1.msra.mxu0 0.0
  %1863 = vmatprep.subr.mxu0 0.0
  %1864 = vmatpush1.msra.mxu0 0.0
  %1865 = vmatprep.subr.mxu0 0.0
  %1866 = vmatpush1.msra.mxu0 0.0
  %1867 = vmatprep.subr.mxu0 0.0
  %1868 = vmatpush1.msra.mxu0 0.0
  %1869 = vmatprep.subr.mxu0 0.0
  %1870 = vmatpush1.msra.mxu0 0.0
  %1871 = vmatprep.subr.mxu0 0.0
  %1872 = vmatpush1.msra.mxu0 0.0
  %1873 = vmatprep.subr.mxu0 0.0
  %1874 = vmatpush1.msra.mxu0 0.0
  %1875 = vmatprep.subr.mxu0 0.0
  %1876 = vmatpush1.msra.mxu0 0.0
  %1877 = vmatprep.subr.mxu0 0.0
  %1878 = vmatpush1.msra.mxu0 0.0
  %1879 = vmatprep.subr.mxu0 0.0
  %1880 = vmatpush1.msra.mxu0 0.0
  %1881 = vmatprep.subr.mxu0 0.0
  %1882 = vmatpush1.msra.mxu0 0.0
  %1883 = vmatprep.subr.mxu0 0.0
  %1884 = vmatpush1.msra.mxu0 0.0
  %1885 = vmatprep.subr.mxu0 0.0
  %1886 = vmatpush1.msra.mxu0 0.0
  %1887 = vmatprep.subr.mxu0 0.0
  %1888 = vmatpush1.msra.mxu0 0.0
  %1889 = vmatprep.subr.mxu0 0.0
  %1890 = vmatpush1.msra.mxu0 0.0
  %1891 = vmatprep.subr.mxu0 0.0
  %1892 = vmatpush1.msra.mxu0 0.0
  %1893 = vmatprep.subr.mxu0 0.0
  %1894 = vmatpush1.msra.mxu0 0.0
  %1895 = vmatprep.subr.mxu0 0.0
  %1896 = vmatpush1.msra.mxu0 0.0
  %1897 = vmatprep.subr.mxu0 0.0
  %1898 = vmatpush1.msra.mxu0 0.0
  %1899 = vmatprep.subr.mxu0 0.0
  %1900 = vmatpush1.msra.mxu0 0.0
  %1901 = vmatprep.subr.mxu0 0.0
  %1902 = vmatpush1.msra.mxu0 0.0
  %1903 = vmatprep.subr.mxu0 0.0
  %1904 = vmatpush1.msra.mxu0 0.0
  %1905 = vmatprep.subr.mxu0 0.0
  %1906 = vmatpush1.msra.mxu0 0.0
  %1907 = vmatprep.subr.mxu0 0.0
  %1908 = vmatpush1.msra.mxu0 0.0
  %1909 = vmatprep.subr.mxu0 0.0
  %1910 = vmatpush1.msra.mxu0 0.0
  %1911 = vmatprep.subr.mxu0 0.0
  %1912 = vmatpush1.msra.mxu0 0.0
  %1913 = vmatprep.subr.mxu0 0.0
  %1914 = vmatpush1.msra.mxu0 0.0
  %1915 = vmatprep.mubr.f32.mxu0 0.0
  %1916 = vmatmul.mubr.f32.gmra.mrb[0].mxu0 %v1840
  %v1917 = vpop.f32.mrb[0].mxu0
  %v1918 = vadd.f32 %v1835, %v1917
  %v1919 = vpop.f32.mrb[0].mxu0
  %1920 = vmatprep.mubr.f32.mxu0 0.0
  %1921 = vmatmul.mubr.f32.gmra.mrb[0].mxu0 %v1843
  %v1922 = vpop.f32.mrb[0].mxu0
  %v1923 = vadd.f32 %v1836, %v1922
  %v1924 = vpop.f32.mrb[0].mxu0
  %1925 = vmatprep.mubr.f32.mxu0 0.0
  %1926 = vmatmul.mubr.f32.gmra.mrb[0].mxu0 %v1846
  %v1927 = vpop.f32.mrb[0].mxu0
  %v1928 = vadd.f32 %v1837, %v1927
  %v1929 = vpop.f32.mrb[0].mxu0
  %1930 = vmatprep.mubr.f32.mxu0 0.0
  %1931 = vmatmul.mubr.f32.gmra.mrb[0].mxu0 %v1849
  %v1932 = vpop.f32.mrb[0].mxu0
  %v1933 = vadd.f32 %v1838, %v1932
  %v1934 = vpop.f32.mrb[0].mxu0
  %1935 = vdwg.mxu0
  %v1936 = vld [vmem:[%s4 + $0x2a0] sm:$0xff]
  %v1937 = vld [vmem:[%s4 + $0x2a8] sm:$0xff]
  %v1938 = vld [vmem:[%s4 + $0x2b0] sm:$0xff]
  %v1939 = vld [vmem:[%s4 + $0x2b8] sm:$0xff]
  %v1940 = vld [vmem:[%s4 + $0x2c0] sm:$0xff]
  %v1941 = vld [vmem:[%s4 + $0x2c8] sm:$0xff]
  %v1942 = vld [vmem:[%s4 + $0x2d0] sm:$0xff]
  %v1943 = vld [vmem:[%s4 + $0x2d8] sm:$0xff]
  %v1944 = vld [vmem:[%s4 + $0x2e0] sm:$0xff]
  %v1945 = vld [vmem:[%s4 + $0x2e8] sm:$0xff]
  %v1946 = vld [vmem:[%s4 + $0x2f0] sm:$0xff]
  %v1947 = vld [vmem:[%s4 + $0x2f8] sm:$0xff]
  %v1948 = vld [vmem:[%s4 + $0x300] sm:$0xff]
  %v1949 = vld [vmem:[%s4 + $0x308] sm:$0xff]
  %v1950 = vld [vmem:[%s4 + $0x310] sm:$0xff]
  %v1951 = vld [vmem:[%s4 + $0x318] sm:$0xff]
  %v1952 = vld [vmem:[%s4 + $0x320] sm:$0xff]
  %v1953 = vld [vmem:[%s4 + $0x328] sm:$0xff]
  %v1954 = vld [vmem:[%s4 + $0x330] sm:$0xff]
  %v1955 = vld [vmem:[%s4 + $0x338] sm:$0xff]
  %v1956 = vld [vmem:[%s4 + $0x340] sm:$0xff]
  %v1957 = vld [vmem:[%s4 + $0x348] sm:$0xff]
  %v1958 = vld [vmem:[%s4 + $0x350] sm:$0xff]
  %v1959 = vld [vmem:[%s4 + $0x358] sm:$0xff]
  %v1960 = vld [vmem:[%s4 + $0x360] sm:$0xff]
  %v1961 = vld [vmem:[%s4 + $0x368] sm:$0xff]
  %v1962 = vld [vmem:[%s4 + $0x370] sm:$0xff]
  %v1963 = vld [vmem:[%s4 + $0x378] sm:$0xff]
  %v1964 = vld [vmem:[%s4 + $0x380] sm:$0xff]
  %v1965 = vld [vmem:[%s4 + $0x388] sm:$0xff]
  %v1966 = vld [vmem:[%s4 + $0x390] sm:$0xff]
  %v1967 = vld [vmem:[%s4 + $0x398] sm:$0xff]
  %s1968 = scalar_lea.vmem %s4, 1088
  %v1969 = vld [vmem:[%s1968] ss:$8 sm:$0x3]
  %v1971 = vlaneseq
  %v1972 = vshrl.u32 %v1971, 7
  %v1973 = vsub.s32 0, %v1972
  %v1974 = vrot.slane %v1969, %v1973
  %v1975 = vlaneseq
  %v1976 = vshrl.u32 %v1975, 7
  %v1977 = vsub.s32 1, %v1976
  %v1978 = vrot.slane %v1969, %v1977
  %1981 = vmatprep.subr.mxu0 %v1937
  %1982 = vmatpush1.msra.mxu0 %v1936
  %1983 = vmatprep.subr.mxu0 %v1939
  %1984 = vmatpush1.msra.mxu0 %v1938
  %1985 = vmatprep.subr.mxu0 %v1941
  %1986 = vmatpush1.msra.mxu0 %v1940
  %1987 = vmatprep.subr.mxu0 %v1943
  %1988 = vmatpush1.msra.mxu0 %v1942
  %1989 = vmatprep.subr.mxu0 %v1945
  %1990 = vmatpush1.msra.mxu0 %v1944
  %1991 = vmatprep.subr.mxu0 %v1947
  %1992 = vmatpush1.msra.mxu0 %v1946
  %1993 = vmatprep.subr.mxu0 %v1949
  %1994 = vmatpush1.msra.mxu0 %v1948
  %1995 = vmatprep.subr.mxu0 %v1951
  %1996 = vmatpush1.msra.mxu0 %v1950
  %1997 = vmatprep.subr.mxu0 %v1953
  %1998 = vmatpush1.msra.mxu0 %v1952
  %1999 = vmatprep.subr.mxu0 %v1955
  %2000 = vmatpush1.msra.mxu0 %v1954
  %2001 = vmatprep.subr.mxu0 %v1957
  %2002 = vmatpush1.msra.mxu0 %v1956
  %2003 = vmatprep.subr.mxu0 %v1959
  %2004 = vmatpush1.msra.mxu0 %v1958
  %2005 = vmatprep.subr.mxu0 %v1961
  %2006 = vmatpush1.msra.mxu0 %v1960
  %2007 = vmatprep.subr.mxu0 %v1963
  %2008 = vmatpush1.msra.mxu0 %v1962
  %2009 = vmatprep.subr.mxu0 %v1965
  %2010 = vmatpush1.msra.mxu0 %v1964
  %2011 = vmatprep.subr.mxu0 %v1967
  %2012 = vmatpush1.msra.mxu0 %v1966
  %2013 = vmatprep.subr.mxu0 0.0
  %2014 = vmatpush1.msra.mxu0 0.0
  %2015 = vmatprep.subr.mxu0 0.0
  %2016 = vmatpush1.msra.mxu0 0.0
  %2017 = vmatprep.subr.mxu0 0.0
  %2018 = vmatpush1.msra.mxu0 0.0
  %2019 = vmatprep.subr.mxu0 0.0
  %2020 = vmatpush1.msra.mxu0 0.0
  %2021 = vmatprep.subr.mxu0 0.0
  %2022 = vmatpush1.msra.mxu0 0.0
  %2023 = vmatprep.subr.mxu0 0.0
  %2024 = vmatpush1.msra.mxu0 0.0
  %2025 = vmatprep.subr.mxu0 0.0
  %2026 = vmatpush1.msra.mxu0 0.0
  %2027 = vmatprep.subr.mxu0 0.0
  %2028 = vmatpush1.msra.mxu0 0.0
  %2029 = vmatprep.subr.mxu0 0.0
  %2030 = vmatpush1.msra.mxu0 0.0
  %2031 = vmatprep.subr.mxu0 0.0
  %2032 = vmatpush1.msra.mxu0 0.0
  %2033 = vmatprep.subr.mxu0 0.0
  %2034 = vmatpush1.msra.mxu0 0.0
  %2035 = vmatprep.subr.mxu0 0.0
  %2036 = vmatpush1.msra.mxu0 0.0
  %2037 = vmatprep.subr.mxu0 0.0
  %2038 = vmatpush1.msra.mxu0 0.0
  %2039 = vmatprep.subr.mxu0 0.0
  %2040 = vmatpush1.msra.mxu0 0.0
  %2041 = vmatprep.subr.mxu0 0.0
  %2042 = vmatpush1.msra.mxu0 0.0
  %2043 = vmatprep.subr.mxu0 0.0
  %2044 = vmatpush1.msra.mxu0 0.0
  %2045 = vmatprep.mubr.f32.mxu0 0.0
  %2046 = vmatmul.mubr.f32.gmra.mrb[0].mxu0 %v1918
  %v2047 = vpop.f32.mrb[0].mxu0
  %v2048 = vadd.f32 %v1974, %v2047
  %v2049 = vpop.f32.mrb[0].mxu0
  %v2050 = vadd.f32 %v1978, %v2049
  %2051 = vmatprep.mubr.f32.mxu0 0.0
  %2052 = vmatmul.mubr.f32.gmra.mrb[0].mxu0 %v1923
  %v2053 = vpop.f32.mrb[0].mxu0
  %v2054 = vadd.f32 %v1974, %v2053
  %v2055 = vpop.f32.mrb[0].mxu0
  %v2056 = vadd.f32 %v1978, %v2055
  %2057 = vmatprep.mubr.f32.mxu0 0.0
  %2058 = vmatmul.mubr.f32.gmra.mrb[0].mxu0 %v1928
  %v2059 = vpop.f32.mrb[0].mxu0
  %v2060 = vadd.f32 %v1974, %v2059
  %v2061 = vpop.f32.mrb[0].mxu0
  %v2062 = vadd.f32 %v1978, %v2061
  %2063 = vmatprep.mubr.f32.mxu0 0.0
  %2064 = vmatmul.mubr.f32.gmra.mrb[0].mxu0 %v1933
  %v2065 = vpop.f32.mrb[0].mxu0
  %v2066 = vadd.f32 %v1974, %v2065
  %v2067 = vpop.f32.mrb[0].mxu0
  %v2068 = vadd.f32 %v1978, %v2067
  %2069 = vdwg.mxu0
  %v2070 = vmax.f32 %v2048, 0.0
  %v2071 = vmax.f32 %v2050, 0.0
  %v2072 = vmax.f32 %v2054, 0.0
  %v2073 = vmax.f32 %v2056, 0.0
  %v2074 = vmax.f32 %v2060, 0.0
  %v2075 = vmax.f32 %v2062, 0.0
  %v2076 = vmax.f32 %v2066, 0.0
  %v2077 = vmax.f32 %v2068, 0.0
  %v2078 = vmin.f32 %v2070, 6.0
  %v2079 = vmin.f32 %v2071, 6.0
  %v2080 = vmin.f32 %v2072, 6.0
  %v2081 = vmin.f32 %v2073, 6.0
  %v2082 = vmin.f32 %v2074, 6.0
  %v2083 = vmin.f32 %v2075, 6.0
  %v2084 = vmin.f32 %v2076, 6.0
  %v2085 = vmin.f32 %v2077, 6.0
  %2086 = vst [vmem:[%s5] sm:$0xff] %v2078
  %2087 = vst [vmem:[%s5 + $0x8] sm:$0xff] %v2079
  %2088 = vst [vmem:[%s5 + $0x10] sm:$0xff] %v2080
  %2089 = vst [vmem:[%s5 + $0x18] sm:$0xff] %v2081
  %2090 = vst [vmem:[%s5 + $0x20] sm:$0xff] %v2082
  %2091 = vst [vmem:[%s5 + $0x28] sm:$0xff] %v2083
  %2092 = vst [vmem:[%s5 + $0x30] sm:$0xff] %v2084
  %2093 = vst [vmem:[%s5 + $0x38] sm:$0xff] %v2085
  // Predicated region
  $region22: #{fpn_m_forward.1} parent=0 // pred_check
    _
  $region23: #{fpn_m_forward.1} parent=0 // pred_check_branch
    %2095 = sbr.rel (0) target = $region25
  $region24: #{fpn_m_forward.1} parent=0 // pred_region
    _
  $region25: #{fpn_m_forward.1} parent=0 // pred_fallthru
    _
  // Predicated region
  $region26: #{fpn_m_forward.1} parent=0 // pred_check
    _
  $region27: #{fpn_m_forward.1} parent=0 // pred_check_branch
    %2097 = sbr.rel (0) target = $region29
  $region28: #{fpn_m_forward.1} parent=0 // pred_region
    _
  $region29: #{fpn_m_forward.1} parent=0 // pred_fallthru
    _

</llo_original>
